<compile_context>
chip_gen: v7x
topology: tpu7x:2x2x1
jax: 0.10.0
libtpu: 0.0.40
codegen_flags: <defaults>
</compile_context>

<pallas_src>
import jax
import jax.numpy as jnp
from jax.experimental import pallas as pl
from jax.experimental.pallas import tpu as pltpu

N_LATENT = 10
HIDDEN = 400
HIDDEN_PAD = 512          # 4 * 128  (lane-dense hidden width)
OUT = 28 * 28             # 784      (exact kernel output width)
OUT_PAD = 896             # 7 * 128  (in-kernel compute width for fc2)
TB_MAX = 512              # max batch tile; ~7.5 MB VMEM -> fits default scoped VMEM everywhere
SPLIT_THRESHOLD = 64      # above this, force >=2 grid steps (v7x 2-TC sharding)


def decoder_kernel(z_ref, w1_ref, b1_ref, w2_ref, b2_ref, out_ref, h_ref):
    # fc1: bf16 x bf16 -> f32 MXU accum, + bias + ReLU (lane-dense 512 cols).
    h = jnp.dot(z_ref[...], w1_ref[...], preferred_element_type=jnp.float32)
    h = jnp.maximum(h + b1_ref[...], 0.0)                 # (tb, 512) + (1, 512)

    # Stage h as bf16 in VMEM: keeps fc2 on the native bf16 MXU path and
    # bounds vreg pressure at large batch tiles.
    h_ref[...] = h.astype(jnp.bfloat16)

    # fc2 + bias + sigmoid at the padded, lane-dense width (896 = 7*128).
    y = jnp.dot(h_ref[...], w2_ref[...], preferred_element_type=jnp.float32)
    y = jax.nn.sigmoid(y + b2_ref[...])                   # (tb, 896) + (1, 896)

    # Store only the 784 real output columns: no padded HBM writeback and no
    # post-kernel column-slice copy.  (16-lane masked tail store is noise.)
    out_ref[...] = y[:, :OUT].astype(out_ref.dtype)


def prepare_params(w1, b1, w2, b2):
    """One-time parameter prep (call once, outside the forward):
    pad to lane-dense shapes and cast weights to bf16.  Zero padding is exact:
    padded b1 cols are 0 so ReLU(0)=0; padded w2 rows are 0 so they add 0;
    padded w2 output cols never leave the kernel."""
    w1p = jnp.pad(w1, ((0, 0), (0, HIDDEN_PAD - HIDDEN))).astype(jnp.bfloat16)
    b1p = jnp.pad(b1.reshape(1, HIDDEN),
                  ((0, 0), (0, HIDDEN_PAD - HIDDEN))).astype(jnp.float32)
    w2p = jnp.pad(w2, ((0, HIDDEN_PAD - HIDDEN),
                       (0, OUT_PAD - OUT))).astype(jnp.bfloat16)
    b2p = jnp.pad(b2.reshape(1, OUT),
                  ((0, 0), (0, OUT_PAD - OUT))).astype(jnp.float32)
    return w1p, b1p, w2p, b2p


def _round_up(x, m):
    return ((x + m - 1) // m) * m


def _pick_tile(B):
    """Batch tile selection.
      * tiny B  -> single block (no per-step overhead)
      * mid B   -> exactly 2 tiles (both v7x TensorCores run the 'parallel' axis)
      * large B -> TB_MAX tiles
    Prefers tiles that keep batch padding minimal (Bp == B when B % 8 == 0)."""
    if B <= SPLIT_THRESHOLD:
        tb = max(8, _round_up(B, 8))
    elif B <= 2 * TB_MAX:
        tb = min(TB_MAX, _round_up((B + 1) // 2, 8))
    else:
        tb = TB_MAX
    Bp = _round_up(B, tb)
    return tb, Bp


@jax.jit
def decoder_forward(z, w1p, b1p, w2p, b2p):
    """z: (B, N_LATENT) f32; params pre-padded by prepare_params().
    Returns (B, 1, 28, 28) f32 (same semantics as the PyTorch Decoder)."""
    B = z.shape[0]
    tb, Bp = _pick_tile(B)

    zp = z.astype(jnp.bfloat16)
    if Bp != B:
        zp = jnp.pad(zp, ((0, Bp - B), (0, 0)))
    grid = (Bp // tb,)

    y = pl.pallas_call(
        decoder_kernel,
        out_shape=jax.ShapeDtypeStruct((Bp, OUT), jnp.float32),
        grid_spec=pltpu.PrefetchScalarGridSpec(
            num_scalar_prefetch=0,
            grid=grid,
            in_specs=[
                pl.BlockSpec((tb, N_LATENT), lambda i: (i, 0)),
                # weights / biases: constant block index -> VMEM-resident
                pl.BlockSpec((N_LATENT, HIDDEN_PAD), lambda i: (0, 0)),
                pl.BlockSpec((1, HIDDEN_PAD), lambda i: (0, 0)),
                pl.BlockSpec((HIDDEN_PAD, OUT_PAD), lambda i: (0, 0)),
                pl.BlockSpec((1, OUT_PAD), lambda i: (0, 0)),
            ],
            # 784 == full last dim of the output array, so this block is legal.
            out_specs=pl.BlockSpec((tb, OUT), lambda i: (i, 0)),
            scratch_shapes=[pltpu.VMEM((tb, HIDDEN_PAD), jnp.bfloat16)],
        ),
        compiler_params=pltpu.CompilerParams(
            # batch axis is independent -> shards across v7x's two TCs
            dimension_semantics=("parallel",),
        ),
    )(zp, w1p, b1p, w2p, b2p)

    if Bp != B:
        y = y[:B]
    # pure metadata reshape when Bp == B (x.view(-1, 1, 28, 28))
    return y.reshape(B, 1, 28, 28)


def init_params(key):
    """Deterministic init mimicking nn.Linear default (U(-1/sqrt(fan_in), +))."""
    k1, k2, k3, k4 = jax.random.split(key, 4)
    bound1 = 1.0 / jnp.sqrt(N_LATENT)
    bound2 = 1.0 / jnp.sqrt(HIDDEN)
    w1 = jax.random.uniform(k1, (N_LATENT, HIDDEN), jnp.float32, -bound1, bound1)
    b1 = jax.random.uniform(k2, (1, HIDDEN), jnp.float32, -bound1, bound1)
    w2 = jax.random.uniform(k3, (HIDDEN, OUT), jnp.float32, -bound2, bound2)
    b2 = jax.random.uniform(k4, (1, OUT), jnp.float32, -bound2, bound2)
    return w1, b1, w2, b2


if __name__ == "__main__":
    key = jax.random.PRNGKey(0)
    kz, kp = jax.random.split(key)

    B = 8
    z = jax.random.normal(kz, (B, N_LATENT), jnp.float32)
    w1, b1, w2, b2 = init_params(kp)

    # one-time parameter prep (padding + bf16 cast hoisted out of the forward)
    params = prepare_params(w1, b1, w2, b2)
    params = jax.block_until_ready(params)

    out = decoder_forward(z, *params)
    out = jax.block_until_ready(out)

    # pure-JAX reference with the same bf16 rounding the kernel applies
    zb = z.astype(jnp.bfloat16).astype(jnp.float32)
    w1b = w1.astype(jnp.bfloat16).astype(jnp.float32)
    w2b = w2.astype(jnp.bfloat16).astype(jnp.float32)
    h_full = jnp.maximum(zb @ w1b + b1, 0.0)
    h_bf = h_full.astype(jnp.bfloat16).astype(jnp.float32)
    y_ref = jax.nn.sigmoid(h_bf @ w2b + b2).reshape(B, 1, 28, 28)

    assert out.shape == (B, 1, 28, 28)
    assert jnp.allclose(out, y_ref, atol=1e-2, rtol=1e-2), (
        float(jnp.max(jnp.abs(out - y_ref)))
    )

    print("KERNEL_OK")
</pallas_src>

<mosaic_0001>
module attributes {stable_mosaic.version = 11 : i64} {
  func.func @decoder_kernel(%arg0: i32, %arg1: memref<8x10xbf16, #tpu.memory_space<vmem>>, %arg2: memref<10x512xbf16, #tpu.memory_space<vmem>>, %arg3: memref<1x512xf32, #tpu.memory_space<vmem>>, %arg4: memref<512x896xbf16, #tpu.memory_space<vmem>>, %arg5: memref<1x896xf32, #tpu.memory_space<vmem>>, %arg6: memref<8x784xf32, #tpu.memory_space<vmem>>, %arg7: memref<8x512xbf16, #tpu.memory_space<vmem>>) attributes {dimension_semantics = [#tpu.dimension_semantics<parallel>], iteration_bounds = array<i64: 1>, scalar_prefetch = 0 : i64, scratch_operands = 1 : i64, tpu.core_type = #tpu.core_type<tc>, window_params = [{transform_indices = @transform_0, window_bounds = array<i64: 8, 10>}, {pipeline_mode = #tpu.pipeline_mode<synchronous>, transform_indices = @transform_1, window_bounds = array<i64: 10, 512>}, {pipeline_mode = #tpu.pipeline_mode<synchronous>, transform_indices = @transform_2, window_bounds = array<i64: 1, 512>}, {pipeline_mode = #tpu.pipeline_mode<synchronous>, transform_indices = @transform_3, window_bounds = array<i64: 512, 896>}, {pipeline_mode = #tpu.pipeline_mode<synchronous>, transform_indices = @transform_4, window_bounds = array<i64: 1, 896>}, {transform_indices = @transform_5, window_bounds = array<i64: 8, 784>}]} {
    %c0 = arith.constant 0 : index
    %c0_0 = arith.constant 0 : index
    %0 = vector.load %arg1[%c0, %c0_0] : memref<8x10xbf16, #tpu.memory_space<vmem>>, vector<8x10xbf16>
    %c0_1 = arith.constant 0 : index
    %c0_2 = arith.constant 0 : index
    %1 = vector.load %arg2[%c0_1, %c0_2] : memref<10x512xbf16, #tpu.memory_space<vmem>>, vector<10x512xbf16>
    %cst = arith.constant dense<0.000000e+00> : vector<8x512xf32>
    %2 = tpu.matmul %0, %1, %cst {dimension_numbers = #tpu.dot_dimension_numbers<[1], [0], [0], [1], [0, 0, 1, 1], [], []>} : vector<8x10xbf16>, vector<10x512xbf16>, vector<8x512xf32> -> vector<8x512xf32>
    %c0_3 = arith.constant 0 : index
    %c0_4 = arith.constant 0 : index
    %3 = vector.load %arg3[%c0_3, %c0_4] : memref<1x512xf32, #tpu.memory_space<vmem>>, vector<1x512xf32>
    %4 = vector.broadcast %3 : vector<1x512xf32> to vector<8x512xf32>
    %5 = arith.addf %2, %4 : vector<8x512xf32>
    %cst_5 = arith.constant 0.000000e+00 : f32
    %6 = vector.broadcast %cst_5 : f32 to vector<8x512xf32>
    %7 = arith.maximumf %5, %6 : vector<8x512xf32>
    %8 = arith.truncf %7 : vector<8x512xf32> to vector<8x512xbf16>
    %c0_6 = arith.constant 0 : index
    %c0_7 = arith.constant 0 : index
    %9 = vector.load %arg7[%c0_6, %c0_7] : memref<8x512xbf16, #tpu.memory_space<vmem>>, vector<8x512xbf16>
    tpu.vector_store %arg7[%c0_6, %c0_7], %8 {strides = array<i32>} : memref<8x512xbf16, #tpu.memory_space<vmem>>, vector<8x512xbf16>,
    %c0_8 = arith.constant 0 : index
    %c0_9 = arith.constant 0 : index
    %10 = vector.load %arg7[%c0_8, %c0_9] : memref<8x512xbf16, #tpu.memory_space<vmem>>, vector<8x512xbf16>
    %c0_10 = arith.constant 0 : index
    %c0_11 = arith.constant 0 : index
    %11 = vector.load %arg4[%c0_10, %c0_11] : memref<512x896xbf16, #tpu.memory_space<vmem>>, vector<512x896xbf16>
    %cst_12 = arith.constant dense<0.000000e+00> : vector<8x896xf32>
    %12 = tpu.matmul %10, %11, %cst_12 {dimension_numbers = #tpu.dot_dimension_numbers<[1], [0], [0], [1], [0, 0, 1, 1], [], []>} : vector<8x512xbf16>, vector<512x896xbf16>, vector<8x896xf32> -> vector<8x896xf32>
    %c0_13 = arith.constant 0 : index
    %c0_14 = arith.constant 0 : index
    %13 = vector.load %arg5[%c0_13, %c0_14] : memref<1x896xf32, #tpu.memory_space<vmem>>, vector<1x896xf32>
    %14 = vector.broadcast %13 : vector<1x896xf32> to vector<8x896xf32>
    %15 = arith.addf %12, %14 : vector<8x896xf32>
    %16 = arith.negf %15 : vector<8x896xf32>
    %17 = math.exp %16 : vector<8x896xf32>
    %cst_15 = arith.constant 1.000000e+00 : f32
    %18 = vector.broadcast %cst_15 : f32 to vector<8x896xf32>
    %19 = arith.addf %18, %17 : vector<8x896xf32>
    %20 = arith.divf %18, %19 : vector<8x896xf32>
    %21 = vector.extract_strided_slice %20 {offsets = [0, 0], sizes = [8, 784], strides = [1, 1]} : vector<8x896xf32> to vector<8x784xf32>
    %c0_16 = arith.constant 0 : index
    %c0_17 = arith.constant 0 : index
    %22 = vector.load %arg6[%c0_16, %c0_17] : memref<8x784xf32, #tpu.memory_space<vmem>>, vector<8x784xf32>
    tpu.vector_store %arg6[%c0_16, %c0_17], %21 {strides = array<i32>} : memref<8x784xf32, #tpu.memory_space<vmem>>, vector<8x784xf32>,
    return
  }
  func.func @transform_0(%arg0: i32) -> (i32, i32) {
    %c0_i32 = arith.constant 0 : i32
    %c0_i32_0 = arith.constant 0 : i32
    return %arg0, %c0_i32 : i32, i32
  }
  func.func @transform_1(%arg0: i32) -> (i32, i32) {
    %c0_i32 = arith.constant 0 : i32
    %c0_i32_0 = arith.constant 0 : i32
    %c0_i32_1 = arith.constant 0 : i32
    return %c0_i32, %c0_i32_0 : i32, i32
  }
  func.func @transform_2(%arg0: i32) -> (i32, i32) {
    %c0_i32 = arith.constant 0 : i32
    %c0_i32_0 = arith.constant 0 : i32
    %c0_i32_1 = arith.constant 0 : i32
    return %c0_i32, %c0_i32_0 : i32, i32
  }
  func.func @transform_3(%arg0: i32) -> (i32, i32) {
    %c0_i32 = arith.constant 0 : i32
    %c0_i32_0 = arith.constant 0 : i32
    %c0_i32_1 = arith.constant 0 : i32
    return %c0_i32, %c0_i32_0 : i32, i32
  }
  func.func @transform_4(%arg0: i32) -> (i32, i32) {
    %c0_i32 = arith.constant 0 : i32
    %c0_i32_0 = arith.constant 0 : i32
    %c0_i32_1 = arith.constant 0 : i32
    return %c0_i32, %c0_i32_0 : i32, i32
  }
  func.func @transform_5(%arg0: i32) -> (i32, i32) {
    %c0_i32 = arith.constant 0 : i32
    %c0_i32_0 = arith.constant 0 : i32
    return %arg0, %c0_i32 : i32, i32
  }
}

</mosaic_0001>

<llo_original>
// kernel: decoder_forward.1
$region0: #{decoder_forward.1}
  #allocation0 [shape = 'u32[]', space=smem, size = 0x4, offset = 0x4, fixed_abs, tag = 'smem constant byte address 0x4 - core index']
  #allocation1 [shape = 'u32[144,128]{1,0:T(1,128)}', space=vmem, size = 0x12000, scoped, tag = 'internal scratch']
  #allocation2 [shape = 'bf16[8,512]{1,0:T(8,128)(2,1)}', space=vmem, size = 0x2000, scoped, tag = 'scratch operand']
  %s0 = inlined_call_operand.vmem [shape: bf16[8,10], index: 0, kind: input, shape index: {}]
  %s1 = inlined_call_operand.hbm [shape: bf16[10,512], index: 1, kind: input, shape index: {}]
  %s2 = inlined_call_operand.vmem [shape: f32[1,512], index: 2, kind: input, shape index: {}]
  %s3 = inlined_call_operand.hbm [shape: bf16[512,896], index: 3, kind: input, shape index: {}]
  %s4 = inlined_call_operand.vmem [shape: f32[1,896], index: 4, kind: input, shape index: {}]
  %s5 = inlined_call_operand.vmem [shape: f32[8,784], index: 5, kind: output, shape index: {}]
  %s6 = sld [smem:[#allocation0]]
  $region38: #{decoder_forward.1} parent=0
    _
  %s8 = ssub.s32 1, %s6
  %s9 = scalar_select 0, %s8, %s6
  $region1: #{decoder_forward.1} parent=0
    #allocation3 [shape = 'u8[16384]{0}', space=vmem, size = 0x4000, scoped, tag = 'input window, operand 1, single buffered']
    #allocation4 [shape = 's32[1]{0}', space=sflag, size = 0x4, scoped, tag = 'scoped memory for decoder_forward.1']
    #allocation5 [shape = 'u8[917504]{0}', space=vmem, size = 0xe0000, scoped, tag = 'input window, operand 3, single buffered']
    #allocation6 [shape = 's32[1]{0}', space=sflag, size = 0x4, scoped, tag = 'scoped memory for decoder_forward.1']
    %10 = vsyncpa [#allocation4], 0
    %11 = vsyncpa [#allocation6], 0
    // Predicated region
    $region2: #{decoder_forward.1} parent=1 // pred_check
      _
    $region3: #{decoder_forward.1} parent=1 // pred_check_branch
      %13 = sbr.rel (0) target = $region5
    $region4: #{decoder_forward.1} parent=1 // pred_region
      _
    $region5: #{decoder_forward.1} parent=1 // pred_fallthru
      _
    // Predicated region
    $region6: #{decoder_forward.1} parent=1 // pred_check
      _
    $region7: #{decoder_forward.1} parent=1 // pred_check_branch
      %15 = sbr.rel (0) target = $region9
    $region8: #{decoder_forward.1} parent=1 // pred_region
      %s17 = ssub.s32 512, 512
      %18 = vsyncadd [#allocation4], %s17
      %s19 = sshll.u32 [#allocation3], 4
      %s20 = int_to_ptr.vmem [resolvable:$true] %s19
      %25 = dma.hbm_to_vmem [thread:$0]  %s1, 512, %s20, [#allocation4], 256, 256, 16
    $region9: #{decoder_forward.1} parent=1 // pred_fallthru
      _
    // Predicated region
    $region10: #{decoder_forward.1} parent=1 // pred_check
      _
    $region11: #{decoder_forward.1} parent=1 // pred_check_branch
      %27 = sbr.rel (0) target = $region13
    $region12: #{decoder_forward.1} parent=1 // pred_region
      _
    $region13: #{decoder_forward.1} parent=1 // pred_fallthru
      _
    // Predicated region
    $region14: #{decoder_forward.1} parent=1 // pred_check
      _
    $region15: #{decoder_forward.1} parent=1 // pred_check_branch
      %29 = sbr.rel (0) target = $region17
    $region16: #{decoder_forward.1} parent=1 // pred_region
      %s31 = ssub.s32 28672, 28672
      %32 = vsyncadd [#allocation6], %s31
      %s33 = sshll.u32 [#allocation5], 4
      %s34 = int_to_ptr.vmem [resolvable:$true] %s33
      %39 = dma.hbm_to_vmem [thread:$0]  %s3, 28672, %s34, [#allocation6], 448, 448, 28
    $region17: #{decoder_forward.1} parent=1 // pred_fallthru
      _
    // Predicated region
    $region18: #{decoder_forward.1} parent=1 // pred_check
      _
    $region19: #{decoder_forward.1} parent=1 // pred_check_branch
      %41 = sbr.rel (0) target = $region21
    $region20: #{decoder_forward.1} parent=1 // pred_region
      _
    $region21: #{decoder_forward.1} parent=1 // pred_fallthru
      _
    // Predicated region
    $region22: #{decoder_forward.1} parent=1 // pred_check
      _
    $region23: #{decoder_forward.1} parent=1 // pred_check_branch
      %43 = sbr.rel (0) target = $region25
    $region24: #{decoder_forward.1} parent=1 // pred_region
      %44 = dma.done [#allocation4], 512
    $region25: #{decoder_forward.1} parent=1 // pred_fallthru
      _
    // Predicated region
    $region26: #{decoder_forward.1} parent=1 // pred_check
      _
    $region27: #{decoder_forward.1} parent=1 // pred_check_branch
      %46 = sbr.rel (0) target = $region29
    $region28: #{decoder_forward.1} parent=1 // pred_region
      %47 = dma.done [#allocation6], 28672
    $region29: #{decoder_forward.1} parent=1 // pred_fallthru
      _
    %v49 = vld [vmem:[%s0] sm:$0xf]
    %v50 = vld [vmem:[#allocation3] sm:$0xff]
    %v51 = vld [vmem:[#allocation3 + $0x8] sm:$0xff]
    %v52 = vld [vmem:[#allocation3 + $0x10] sm:$0x11]
    %v53 = vld [vmem:[#allocation3 + $0x18] sm:$0x11]
    %v54 = vld [vmem:[%s2] sm:$0xf]
    %v56 = vlaneseq
    %v57 = vshrl.u32 %v56, 7
    %v58 = vsub.s32 0, %v57
    %v59 = vrot.slane %v54, %v58
    %v60 = vlaneseq
    %v61 = vshrl.u32 %v60, 7
    %v62 = vsub.s32 1, %v61
    %v63 = vrot.slane %v54, %v62
    %v64 = vlaneseq
    %v65 = vshrl.u32 %v64, 7
    %v66 = vsub.s32 2, %v65
    %v67 = vrot.slane %v54, %v66
    %v68 = vlaneseq
    %v69 = vshrl.u32 %v68, 7
    %v70 = vsub.s32 3, %v69
    %v71 = vrot.slane %v54, %v70
    %v80 = vunpack.c.l.b16 %v50
    %v81 = vunpack.c.h.b16 %v50
    %v82 = vunpack.c.l.b16 %v51
    %v83 = vunpack.c.h.b16 %v51
    %v84 = vunpack.c.l.b16 %v52
    %v85 = vunpack.c.h.b16 %v52
    %v86 = vunpack.c.l.b16 %v53
    %v87 = vunpack.c.h.b16 %v53
    %v88 = vpack.c.b16 %v84, %v80
    %v89 = vpack.c.b16 %v85, %v81
    %v90 = vpack.c.b16 %v86, %v82
    %v91 = vpack.c.b16 %v87, %v83
    %vm92 = vcmask 80896
    %v94 = vsel %vm92, %v49, 0
    %vm96 = vcmask 1044480
    %v98 = vsel %vm96, %v88, 0
    %v101 = vsel %vm96, %v89, 0
    %v104 = vsel %vm96, %v90, 0
    %v107 = vsel %vm96, %v91, 0
    %109 = vmatprep.subr.bf16.mxu0 %v101
    %110 = vmatpush1.bf16.msra.mxu0 %v98
    %111 = vmatprep.subr.bf16.mxu0 0
    %112 = vmatpush1.bf16.msra.mxu0 0
    %113 = vmatprep.subr.bf16.mxu0 0
    %114 = vmatpush1.bf16.msra.mxu0 0
    %115 = vmatprep.subr.bf16.mxu0 0
    %116 = vmatpush1.bf16.msra.mxu0 0
    %117 = vmatprep.subr.bf16.mxu0 0
    %118 = vmatpush1.bf16.msra.mxu0 0
    %119 = vmatprep.subr.bf16.mxu0 0
    %120 = vmatpush1.bf16.msra.mxu0 0
    %121 = vmatprep.subr.bf16.mxu0 0
    %122 = vmatpush1.bf16.msra.mxu0 0
    %123 = vmatprep.subr.bf16.mxu0 0
    %124 = vmatpush1.bf16.msra.mxu0 0
    %125 = vmatprep.subr.bf16.mxu0 0
    %126 = vmatpush1.bf16.msra.mxu0 0
    %127 = vmatprep.subr.bf16.mxu0 0
    %128 = vmatpush1.bf16.msra.mxu0 0
    %129 = vmatprep.subr.bf16.mxu0 0
    %130 = vmatpush1.bf16.msra.mxu0 0
    %131 = vmatprep.subr.bf16.mxu0 0
    %132 = vmatpush1.bf16.msra.mxu0 0
    %133 = vmatprep.subr.bf16.mxu0 0
    %134 = vmatpush1.bf16.msra.mxu0 0
    %135 = vmatprep.subr.bf16.mxu0 0
    %136 = vmatpush1.bf16.msra.mxu0 0
    %137 = vmatprep.subr.bf16.mxu0 0
    %138 = vmatpush1.bf16.msra.mxu0 0
    %139 = vmatprep.subr.bf16.mxu0 0
    %140 = vmatpush1.bf16.msra.mxu0 0
    %141 = vmatprep.mubr.bf16.mxu0 0
    %142 = vmatmul.mubr.bf16.gmra.mrb[0].mxu0 %v94
    %v143 = vpop.f32.mrb[0].mxu0
    %v144 = vadd.f32 %v59, %v143
    %v145 = vpop.f32.mrb[0].mxu0
    %v146 = vadd.f32 %v63, %v145
    %v147 = vpop.f32.mrb[0].mxu0
    %v148 = vpop.f32.mrb[0].mxu0
    %149 = vdwg.mxu0
    %150 = vmatprep.subr.bf16.mxu0 %v107
    %151 = vmatpush1.bf16.msra.mxu0 %v104
    %152 = vmatprep.subr.bf16.mxu0 0
    %153 = vmatpush1.bf16.msra.mxu0 0
    %154 = vmatprep.subr.bf16.mxu0 0
    %155 = vmatpush1.bf16.msra.mxu0 0
    %156 = vmatprep.subr.bf16.mxu0 0
    %157 = vmatpush1.bf16.msra.mxu0 0
    %158 = vmatprep.subr.bf16.mxu0 0
    %159 = vmatpush1.bf16.msra.mxu0 0
    %160 = vmatprep.subr.bf16.mxu0 0
    %161 = vmatpush1.bf16.msra.mxu0 0
    %162 = vmatprep.subr.bf16.mxu0 0
    %163 = vmatpush1.bf16.msra.mxu0 0
    %164 = vmatprep.subr.bf16.mxu0 0
    %165 = vmatpush1.bf16.msra.mxu0 0
    %166 = vmatprep.subr.bf16.mxu0 0
    %167 = vmatpush1.bf16.msra.mxu0 0
    %168 = vmatprep.subr.bf16.mxu0 0
    %169 = vmatpush1.bf16.msra.mxu0 0
    %170 = vmatprep.subr.bf16.mxu0 0
    %171 = vmatpush1.bf16.msra.mxu0 0
    %172 = vmatprep.subr.bf16.mxu0 0
    %173 = vmatpush1.bf16.msra.mxu0 0
    %174 = vmatprep.subr.bf16.mxu0 0
    %175 = vmatpush1.bf16.msra.mxu0 0
    %176 = vmatprep.subr.bf16.mxu0 0
    %177 = vmatpush1.bf16.msra.mxu0 0
    %178 = vmatprep.subr.bf16.mxu0 0
    %179 = vmatpush1.bf16.msra.mxu0 0
    %180 = vmatprep.subr.bf16.mxu0 0
    %181 = vmatpush1.bf16.msra.mxu0 0
    %182 = vmatprep.mubr.bf16.mxu0 0
    %183 = vmatmul.mubr.bf16.gmra.mrb[0].mxu0 %v94
    %v184 = vpop.f32.mrb[0].mxu0
    %v185 = vadd.f32 %v67, %v184
    %v186 = vpop.f32.mrb[0].mxu0
    %v187 = vadd.f32 %v71, %v186
    %v188 = vpop.f32.mrb[0].mxu0
    %v189 = vpop.f32.mrb[0].mxu0
    %190 = vdwg.mxu0
    %v191 = vmax.f32 %v144, 0.0
    %v192 = vmax.f32 %v146, 0.0
    %v193 = vmax.f32 %v185, 0.0
    %v194 = vmax.f32 %v187, 0.0
    %v195 = vpack.c.bf16 %v191, %v191
    %v196 = vpack.c.bf16 %v192, %v192
    %v197 = vpack.c.bf16 %v193, %v193
    %v198 = vpack.c.bf16 %v194, %v194
    %v203 = vunpack.c.l.b16 %v195
    %v204 = vunpack.c.l.b16 %v196
    %v205 = vunpack.c.l.b16 %v197
    %v206 = vunpack.c.l.b16 %v198
    %v207 = vpack.c.b16 %v204, %v203
    %v208 = vpack.c.b16 %v206, %v205
    %211 = vst [vmem:[#allocation2] sm:$0xff] %v207
    %212 = vst [vmem:[#allocation2 + $0x8] sm:$0xff] %v208
    %v213 = vld [vmem:[#allocation2] sm:$0xff]
    %v214 = vld [vmem:[#allocation2 + $0x8] sm:$0xff]
    %v215 = vld [vmem:[#allocation5] sm:$0xff]
    %v216 = vld [vmem:[#allocation5 + $0x8] sm:$0xff]
    %v217 = vld [vmem:[#allocation5 + $0x10] sm:$0xff]
    %v218 = vld [vmem:[#allocation5 + $0x18] sm:$0xf]
    %v219 = vld [vmem:[#allocation5 + $0x1c] sm:$0xff]
    %v220 = vld [vmem:[#allocation5 + $0x24] sm:$0xff]
    %v221 = vld [vmem:[#allocation5 + $0x2c] sm:$0xff]
    %v222 = vld [vmem:[#allocation5 + $0x34] sm:$0xf]
    %v223 = vld [vmem:[#allocation5 + $0x38] sm:$0xff]
    %v224 = vld [vmem:[#allocation5 + $0x40] sm:$0xff]
    %v225 = vld [vmem:[#allocation5 + $0x48] sm:$0xff]
    %v226 = vld [vmem:[#allocation5 + $0x50] sm:$0xf]
    %v227 = vld [vmem:[#allocation5 + $0x54] sm:$0xff]
    %v228 = vld [vmem:[#allocation5 + $0x5c] sm:$0xff]
    %v229 = vld [vmem:[#allocation5 + $0x64] sm:$0xff]
    %v230 = vld [vmem:[#allocation5 + $0x6c] sm:$0xf]
    %v231 = vld [vmem:[#allocation5 + $0x70] sm:$0xff]
    %v232 = vld [vmem:[#allocation5 + $0x78] sm:$0xff]
    %v233 = vld [vmem:[#allocation5 + $0x80] sm:$0xff]
    %v234 = vld [vmem:[#allocation5 + $0x88] sm:$0xf]
    %v235 = vld [vmem:[#allocation5 + $0x8c] sm:$0xff]
    %v236 = vld [vmem:[#allocation5 + $0x94] sm:$0xff]
    %v237 = vld [vmem:[#allocation5 + $0x9c] sm:$0xff]
    %v238 = vld [vmem:[#allocation5 + $0xa4] sm:$0xf]
    %v239 = vld [vmem:[#allocation5 + $0xa8] sm:$0xff]
    %v240 = vld [vmem:[#allocation5 + $0xb0] sm:$0xff]
    %v241 = vld [vmem:[#allocation5 + $0xb8] sm:$0xff]
    %v242 = vld [vmem:[#allocation5 + $0xc0] sm:$0xf]
    %v243 = vld [vmem:[#allocation5 + $0xc4] sm:$0xff]
    %v244 = vld [vmem:[#allocation5 + $0xcc] sm:$0xff]
    %v245 = vld [vmem:[#allocation5 + $0xd4] sm:$0xff]
    %v246 = vld [vmem:[#allocation5 + $0xdc] sm:$0xf]
    %v247 = vld [vmem:[#allocation5 + $0xe0] sm:$0xff]
    %v248 = vld [vmem:[#allocation5 + $0xe8] sm:$0xff]
    %v249 = vld [vmem:[#allocation5 + $0xf0] sm:$0xff]
    %v250 = vld [vmem:[#allocation5 + $0xf8] sm:$0xf]
    %v251 = vld [vmem:[#allocation5 + $0xfc] sm:$0xff]
    %v252 = vld [vmem:[#allocation5 + $0x104] sm:$0xff]
    %v253 = vld [vmem:[#allocation5 + $0x10c] sm:$0xff]
    %v254 = vld [vmem:[#allocation5 + $0x114] sm:$0xf]
    %v255 = vld [vmem:[#allocation5 + $0x118] sm:$0xff]
    %v256 = vld [vmem:[#allocation5 + $0x120] sm:$0xff]
    %v257 = vld [vmem:[#allocation5 + $0x128] sm:$0xff]
    %v258 = vld [vmem:[#allocation5 + $0x130] sm:$0xf]
    %v259 = vld [vmem:[#allocation5 + $0x134] sm:$0xff]
    %v260 = vld [vmem:[#allocation5 + $0x13c] sm:$0xff]
    %v261 = vld [vmem:[#allocation5 + $0x144] sm:$0xff]
    %v262 = vld [vmem:[#allocation5 + $0x14c] sm:$0xf]
    %v263 = vld [vmem:[#allocation5 + $0x150] sm:$0xff]
    %v264 = vld [vmem:[#allocation5 + $0x158] sm:$0xff]
    %v265 = vld [vmem:[#allocation5 + $0x160] sm:$0xff]
    %v266 = vld [vmem:[#allocation5 + $0x168] sm:$0xf]
    %v267 = vld [vmem:[#allocation5 + $0x16c] sm:$0xff]
    %v268 = vld [vmem:[#allocation5 + $0x174] sm:$0xff]
    %v269 = vld [vmem:[#allocation5 + $0x17c] sm:$0xff]
    %v270 = vld [vmem:[#allocation5 + $0x184] sm:$0xf]
    %v271 = vld [vmem:[#allocation5 + $0x188] sm:$0xff]
    %v272 = vld [vmem:[#allocation5 + $0x190] sm:$0xff]
    %v273 = vld [vmem:[#allocation5 + $0x198] sm:$0xff]
    %v274 = vld [vmem:[#allocation5 + $0x1a0] sm:$0xf]
    %v275 = vld [vmem:[#allocation5 + $0x1a4] sm:$0xff]
    %v276 = vld [vmem:[#allocation5 + $0x1ac] sm:$0xff]
    %v277 = vld [vmem:[#allocation5 + $0x1b4] sm:$0xff]
    %v278 = vld [vmem:[#allocation5 + $0x1bc] sm:$0xf]
    %v279 = vld [vmem:[#allocation5 + $0x1c0] sm:$0xff]
    %v280 = vld [vmem:[#allocation5 + $0x1c8] sm:$0xff]
    %v281 = vld [vmem:[#allocation5 + $0x1d0] sm:$0xff]
    %v282 = vld [vmem:[#allocation5 + $0x1d8] sm:$0xf]
    %v283 = vld [vmem:[#allocation5 + $0x1dc] sm:$0xff]
    %v284 = vld [vmem:[#allocation5 + $0x1e4] sm:$0xff]
    %v285 = vld [vmem:[#allocation5 + $0x1ec] sm:$0xff]
    %v286 = vld [vmem:[#allocation5 + $0x1f4] sm:$0xf]
    %v287 = vld [vmem:[#allocation5 + $0x1f8] sm:$0xff]
    %v288 = vld [vmem:[#allocation5 + $0x200] sm:$0xff]
    %v289 = vld [vmem:[#allocation5 + $0x208] sm:$0xff]
    %v290 = vld [vmem:[#allocation5 + $0x210] sm:$0xf]
    %v291 = vld [vmem:[#allocation5 + $0x214] sm:$0xff]
    %v292 = vld [vmem:[#allocation5 + $0x21c] sm:$0xff]
    %v293 = vld [vmem:[#allocation5 + $0x224] sm:$0xff]
    %v294 = vld [vmem:[#allocation5 + $0x22c] sm:$0xf]
    %v295 = vld [vmem:[#allocation5 + $0x230] sm:$0xff]
    %v296 = vld [vmem:[#allocation5 + $0x238] sm:$0xff]
    %v297 = vld [vmem:[#allocation5 + $0x240] sm:$0xff]
    %v298 = vld [vmem:[#allocation5 + $0x248] sm:$0xf]
    %v299 = vld [vmem:[#allocation5 + $0x24c] sm:$0xff]
    %v300 = vld [vmem:[#allocation5 + $0x254] sm:$0xff]
    %v301 = vld [vmem:[#allocation5 + $0x25c] sm:$0xff]
    %v302 = vld [vmem:[#allocation5 + $0x264] sm:$0xf]
    %v303 = vld [vmem:[#allocation5 + $0x268] sm:$0xff]
    %v304 = vld [vmem:[#allocation5 + $0x270] sm:$0xff]
    %v305 = vld [vmem:[#allocation5 + $0x278] sm:$0xff]
    %v306 = vld [vmem:[#allocation5 + $0x280] sm:$0xf]
    %v307 = vld [vmem:[#allocation5 + $0x284] sm:$0xff]
    %v308 = vld [vmem:[#allocation5 + $0x28c] sm:$0xff]
    %v309 = vld [vmem:[#allocation5 + $0x294] sm:$0xff]
    %v310 = vld [vmem:[#allocation5 + $0x29c] sm:$0xf]
    %v311 = vld [vmem:[#allocation5 + $0x2a0] sm:$0xff]
    %v312 = vld [vmem:[#allocation5 + $0x2a8] sm:$0xff]
    %v313 = vld [vmem:[#allocation5 + $0x2b0] sm:$0xff]
    %v314 = vld [vmem:[#allocation5 + $0x2b8] sm:$0xf]
    %v315 = vld [vmem:[#allocation5 + $0x2bc] sm:$0xff]
    %v316 = vld [vmem:[#allocation5 + $0x2c4] sm:$0xff]
    %v317 = vld [vmem:[#allocation5 + $0x2cc] sm:$0xff]
    %v318 = vld [vmem:[#allocation5 + $0x2d4] sm:$0xf]
    %v319 = vld [vmem:[#allocation5 + $0x2d8] sm:$0xff]
    %v320 = vld [vmem:[#allocation5 + $0x2e0] sm:$0xff]
    %v321 = vld [vmem:[#allocation5 + $0x2e8] sm:$0xff]
    %v322 = vld [vmem:[#allocation5 + $0x2f0] sm:$0xf]
    %v323 = vld [vmem:[#allocation5 + $0x2f4] sm:$0xff]
    %v324 = vld [vmem:[#allocation5 + $0x2fc] sm:$0xff]
    %v325 = vld [vmem:[#allocation5 + $0x304] sm:$0xff]
    %v326 = vld [vmem:[#allocation5 + $0x30c] sm:$0xf]
    %v327 = vld [vmem:[#allocation5 + $0x310] sm:$0xff]
    %v328 = vld [vmem:[#allocation5 + $0x318] sm:$0xff]
    %v329 = vld [vmem:[#allocation5 + $0x320] sm:$0xff]
    %v330 = vld [vmem:[#allocation5 + $0x328] sm:$0xf]
    %v331 = vld [vmem:[#allocation5 + $0x32c] sm:$0xff]
    %v332 = vld [vmem:[#allocation5 + $0x334] sm:$0xff]
    %v333 = vld [vmem:[#allocation5 + $0x33c] sm:$0xff]
    %v334 = vld [vmem:[#allocation5 + $0x344] sm:$0xf]
    %v335 = vld [vmem:[#allocation5 + $0x348] sm:$0xff]
    %v336 = vld [vmem:[#allocation5 + $0x350] sm:$0xff]
    %v337 = vld [vmem:[#allocation5 + $0x358] sm:$0xff]
    %v338 = vld [vmem:[#allocation5 + $0x360] sm:$0xf]
    %v339 = vld [vmem:[#allocation5 + $0x364] sm:$0xff]
    %v340 = vld [vmem:[#allocation5 + $0x36c] sm:$0xff]
    %v341 = vld [vmem:[#allocation5 + $0x374] sm:$0xff]
    %v342 = vld [vmem:[#allocation5 + $0x37c] sm:$0xf]
    %v343 = vld [vmem:[#allocation5 + $0x380] sm:$0xff]
    %v344 = vld [vmem:[#allocation5 + $0x388] sm:$0xff]
    %v345 = vld [vmem:[#allocation5 + $0x390] sm:$0xff]
    %v346 = vld [vmem:[#allocation5 + $0x398] sm:$0xf]
    %v347 = vld [vmem:[#allocation5 + $0x39c] sm:$0xff]
    %v348 = vld [vmem:[#allocation5 + $0x3a4] sm:$0xff]
    %v349 = vld [vmem:[#allocation5 + $0x3ac] sm:$0xff]
    %v350 = vld [vmem:[#allocation5 + $0x3b4] sm:$0xf]
    %v351 = vld [vmem:[#allocation5 + $0x3b8] sm:$0xff]
    %v352 = vld [vmem:[#allocation5 + $0x3c0] sm:$0xff]
    %v353 = vld [vmem:[#allocation5 + $0x3c8] sm:$0xff]
    %v354 = vld [vmem:[#allocation5 + $0x3d0] sm:$0xf]
    %v355 = vld [vmem:[#allocation5 + $0x3d4] sm:$0xff]
    %v356 = vld [vmem:[#allocation5 + $0x3dc] sm:$0xff]
    %v357 = vld [vmem:[#allocation5 + $0x3e4] sm:$0xff]
    %v358 = vld [vmem:[#allocation5 + $0x3ec] sm:$0xf]
    %v359 = vld [vmem:[#allocation5 + $0x3f0] sm:$0xff]
    %v360 = vld [vmem:[#allocation5 + $0x3f8] sm:$0xff]
    %v361 = vld [vmem:[#allocation5 + $0x400] sm:$0xff]
    %v362 = vld [vmem:[#allocation5 + $0x408] sm:$0xf]
    %v363 = vld [vmem:[#allocation5 + $0x40c] sm:$0xff]
    %v364 = vld [vmem:[#allocation5 + $0x414] sm:$0xff]
    %v365 = vld [vmem:[#allocation5 + $0x41c] sm:$0xff]
    %v366 = vld [vmem:[#allocation5 + $0x424] sm:$0xf]
    %v367 = vld [vmem:[#allocation5 + $0x428] sm:$0xff]
    %v368 = vld [vmem:[#allocation5 + $0x430] sm:$0xff]
    %v369 = vld [vmem:[#allocation5 + $0x438] sm:$0xff]
    %v370 = vld [vmem:[#allocation5 + $0x440] sm:$0xf]
    %v371 = vld [vmem:[#allocation5 + $0x444] sm:$0xff]
    %v372 = vld [vmem:[#allocation5 + $0x44c] sm:$0xff]
    %v373 = vld [vmem:[#allocation5 + $0x454] sm:$0xff]
    %v374 = vld [vmem:[#allocation5 + $0x45c] sm:$0xf]
    %v375 = vld [vmem:[#allocation5 + $0x460] sm:$0xff]
    %v376 = vld [vmem:[#allocation5 + $0x468] sm:$0xff]
    %v377 = vld [vmem:[#allocation5 + $0x470] sm:$0xff]
    %v378 = vld [vmem:[#allocation5 + $0x478] sm:$0xf]
    %v379 = vld [vmem:[#allocation5 + $0x47c] sm:$0xff]
    %v380 = vld [vmem:[#allocation5 + $0x484] sm:$0xff]
    %v381 = vld [vmem:[#allocation5 + $0x48c] sm:$0xff]
    %v382 = vld [vmem:[#allocation5 + $0x494] sm:$0xf]
    %v383 = vld [vmem:[#allocation5 + $0x498] sm:$0xff]
    %v384 = vld [vmem:[#allocation5 + $0x4a0] sm:$0xff]
    %v385 = vld [vmem:[#allocation5 + $0x4a8] sm:$0xff]
    %v386 = vld [vmem:[#allocation5 + $0x4b0] sm:$0xf]
    %v387 = vld [vmem:[#allocation5 + $0x4b4] sm:$0xff]
    %v388 = vld [vmem:[#allocation5 + $0x4bc] sm:$0xff]
    %v389 = vld [vmem:[#allocation5 + $0x4c4] sm:$0xff]
    %v390 = vld [vmem:[#allocation5 + $0x4cc] sm:$0xf]
    %v391 = vld [vmem:[#allocation5 + $0x4d0] sm:$0xff]
    %v392 = vld [vmem:[#allocation5 + $0x4d8] sm:$0xff]
    %v393 = vld [vmem:[#allocation5 + $0x4e0] sm:$0xff]
    %v394 = vld [vmem:[#allocation5 + $0x4e8] sm:$0xf]
    %v395 = vld [vmem:[#allocation5 + $0x4ec] sm:$0xff]
    %v396 = vld [vmem:[#allocation5 + $0x4f4] sm:$0xff]
    %v397 = vld [vmem:[#allocation5 + $0x4fc] sm:$0xff]
    %v398 = vld [vmem:[#allocation5 + $0x504] sm:$0xf]
    %v399 = vld [vmem:[#allocation5 + $0x508] sm:$0xff]
    %v400 = vld [vmem:[#allocation5 + $0x510] sm:$0xff]
    %v401 = vld [vmem:[#allocation5 + $0x518] sm:$0xff]
    %v402 = vld [vmem:[#allocation5 + $0x520] sm:$0xf]
    %v403 = vld [vmem:[#allocation5 + $0x524] sm:$0xff]
    %v404 = vld [vmem:[#allocation5 + $0x52c] sm:$0xff]
    %v405 = vld [vmem:[#allocation5 + $0x534] sm:$0xff]
    %v406 = vld [vmem:[#allocation5 + $0x53c] sm:$0xf]
    %v407 = vld [vmem:[#allocation5 + $0x540] sm:$0xff]
    %v408 = vld [vmem:[#allocation5 + $0x548] sm:$0xff]
    %v409 = vld [vmem:[#allocation5 + $0x550] sm:$0xff]
    %v410 = vld [vmem:[#allocation5 + $0x558] sm:$0xf]
    %v411 = vld [vmem:[#allocation5 + $0x55c] sm:$0xff]
    %v412 = vld [vmem:[#allocation5 + $0x564] sm:$0xff]
    %v413 = vld [vmem:[#allocation5 + $0x56c] sm:$0xff]
    %v414 = vld [vmem:[#allocation5 + $0x574] sm:$0xf]
    %v415 = vld [vmem:[#allocation5 + $0x578] sm:$0xff]
    %v416 = vld [vmem:[#allocation5 + $0x580] sm:$0xff]
    %v417 = vld [vmem:[#allocation5 + $0x588] sm:$0xff]
    %v418 = vld [vmem:[#allocation5 + $0x590] sm:$0xf]
    %v419 = vld [vmem:[#allocation5 + $0x594] sm:$0xff]
    %v420 = vld [vmem:[#allocation5 + $0x59c] sm:$0xff]
    %v421 = vld [vmem:[#allocation5 + $0x5a4] sm:$0xff]
    %v422 = vld [vmem:[#allocation5 + $0x5ac] sm:$0xf]
    %v423 = vld [vmem:[#allocation5 + $0x5b0] sm:$0xff]
    %v424 = vld [vmem:[#allocation5 + $0x5b8] sm:$0xff]
    %v425 = vld [vmem:[#allocation5 + $0x5c0] sm:$0xff]
    %v426 = vld [vmem:[#allocation5 + $0x5c8] sm:$0xf]
    %v427 = vld [vmem:[#allocation5 + $0x5cc] sm:$0xff]
    %v428 = vld [vmem:[#allocation5 + $0x5d4] sm:$0xff]
    %v429 = vld [vmem:[#allocation5 + $0x5dc] sm:$0xff]
    %v430 = vld [vmem:[#allocation5 + $0x5e4] sm:$0xf]
    %v431 = vld [vmem:[#allocation5 + $0x5e8] sm:$0xff]
    %v432 = vld [vmem:[#allocation5 + $0x5f0] sm:$0xff]
    %v433 = vld [vmem:[#allocation5 + $0x5f8] sm:$0xff]
    %v434 = vld [vmem:[#allocation5 + $0x600] sm:$0xf]
    %v435 = vld [vmem:[#allocation5 + $0x604] sm:$0xff]
    %v436 = vld [vmem:[#allocation5 + $0x60c] sm:$0xff]
    %v437 = vld [vmem:[#allocation5 + $0x614] sm:$0xff]
    %v438 = vld [vmem:[#allocation5 + $0x61c] sm:$0xf]
    %v439 = vld [vmem:[#allocation5 + $0x620] sm:$0xff]
    %v440 = vld [vmem:[#allocation5 + $0x628] sm:$0xff]
    %v441 = vld [vmem:[#allocation5 + $0x630] sm:$0xff]
    %v442 = vld [vmem:[#allocation5 + $0x638] sm:$0xf]
    %v443 = vld [vmem:[#allocation5 + $0x63c] sm:$0xff]
    %v444 = vld [vmem:[#allocation5 + $0x644] sm:$0xff]
    %v445 = vld [vmem:[#allocation5 + $0x64c] sm:$0xff]
    %v446 = vld [vmem:[#allocation5 + $0x654] sm:$0xf]
    %v447 = vld [vmem:[#allocation5 + $0x658] sm:$0xff]
    %v448 = vld [vmem:[#allocation5 + $0x660] sm:$0xff]
    %v449 = vld [vmem:[#allocation5 + $0x668] sm:$0xff]
    %v450 = vld [vmem:[#allocation5 + $0x670] sm:$0xf]
    %v451 = vld [vmem:[#allocation5 + $0x674] sm:$0xff]
    %v452 = vld [vmem:[#allocation5 + $0x67c] sm:$0xff]
    %v453 = vld [vmem:[#allocation5 + $0x684] sm:$0xff]
    %v454 = vld [vmem:[#allocation5 + $0x68c] sm:$0xf]
    %v455 = vld [vmem:[#allocation5 + $0x690] sm:$0xff]
    %v456 = vld [vmem:[#allocation5 + $0x698] sm:$0xff]
    %v457 = vld [vmem:[#allocation5 + $0x6a0] sm:$0xff]
    %v458 = vld [vmem:[#allocation5 + $0x6a8] sm:$0xf]
    %v459 = vld [vmem:[#allocation5 + $0x6ac] sm:$0xff]
    %v460 = vld [vmem:[#allocation5 + $0x6b4] sm:$0xff]
    %v461 = vld [vmem:[#allocation5 + $0x6bc] sm:$0xff]
    %v462 = vld [vmem:[#allocation5 + $0x6c4] sm:$0xf]
    %v463 = vld [vmem:[#allocation5 + $0x6c8] sm:$0xff]
    %v464 = vld [vmem:[#allocation5 + $0x6d0] sm:$0xff]
    %v465 = vld [vmem:[#allocation5 + $0x6d8] sm:$0xff]
    %v466 = vld [vmem:[#allocation5 + $0x6e0] sm:$0xf]
    %v467 = vld [vmem:[#allocation5 + $0x6e4] sm:$0xff]
    %v468 = vld [vmem:[#allocation5 + $0x6ec] sm:$0xff]
    %v469 = vld [vmem:[#allocation5 + $0x6f4] sm:$0xff]
    %v470 = vld [vmem:[#allocation5 + $0x6fc] sm:$0xf]
    %v471 = vld [vmem:[%s4] sm:$0xff]
    %v473 = vlaneseq
    %v474 = vshrl.u32 %v473, 7
    %v475 = vsub.s32 0, %v474
    %v476 = vrot.slane %v471, %v475
    %v477 = vlaneseq
    %v478 = vshrl.u32 %v477, 7
    %v479 = vsub.s32 1, %v478
    %v480 = vrot.slane %v471, %v479
    %v481 = vlaneseq
    %v482 = vshrl.u32 %v481, 7
    %v483 = vsub.s32 2, %v482
    %v484 = vrot.slane %v471, %v483
    %v485 = vlaneseq
    %v486 = vshrl.u32 %v485, 7
    %v487 = vsub.s32 3, %v486
    %v488 = vrot.slane %v471, %v487
    %v489 = vlaneseq
    %v490 = vshrl.u32 %v489, 7
    %v491 = vsub.s32 4, %v490
    %v492 = vrot.slane %v471, %v491
    %v493 = vlaneseq
    %v494 = vshrl.u32 %v493, 7
    %v495 = vsub.s32 5, %v494
    %v496 = vrot.slane %v471, %v495
    %v497 = vlaneseq
    %v498 = vshrl.u32 %v497, 7
    %v499 = vsub.s32 6, %v498
    %v500 = vrot.slane %v471, %v499
    %v510 = vunpack.c.l.b16 %v213
    %v511 = vunpack.c.h.b16 %v213
    %v512 = vunpack.c.l.b16 %v214
    %v513 = vunpack.c.h.b16 %v214
    %v514 = vpack.c.b16 %v510, %v510
    %v515 = vpack.c.b16 %v511, %v511
    %v516 = vpack.c.b16 %v512, %v512
    %v517 = vpack.c.b16 %v513, %v513
    %v778 = vunpack.c.l.b16 %v215
    %v779 = vunpack.c.h.b16 %v215
    %v780 = vunpack.c.l.b16 %v216
    %v781 = vunpack.c.h.b16 %v216
    %v782 = vunpack.c.l.b16 %v217
    %v783 = vunpack.c.h.b16 %v217
    %v784 = vunpack.c.l.b16 %v218
    %v785 = vunpack.c.l.b16 %v219
    %v786 = vunpack.c.h.b16 %v219
    %v787 = vunpack.c.l.b16 %v220
    %v788 = vunpack.c.h.b16 %v220
    %v789 = vunpack.c.l.b16 %v221
    %v790 = vunpack.c.h.b16 %v221
    %v791 = vunpack.c.l.b16 %v222
    %v792 = vunpack.c.l.b16 %v223
    %v793 = vunpack.c.h.b16 %v223
    %v794 = vunpack.c.l.b16 %v224
    %v795 = vunpack.c.h.b16 %v224
    %v796 = vunpack.c.l.b16 %v225
    %v797 = vunpack.c.h.b16 %v225
    %v798 = vunpack.c.l.b16 %v226
    %v799 = vunpack.c.l.b16 %v227
    %v800 = vunpack.c.h.b16 %v227
    %v801 = vunpack.c.l.b16 %v228
    %v802 = vunpack.c.h.b16 %v228
    %v803 = vunpack.c.l.b16 %v229
    %v804 = vunpack.c.h.b16 %v229
    %v805 = vunpack.c.l.b16 %v230
    %v806 = vunpack.c.l.b16 %v231
    %v807 = vunpack.c.h.b16 %v231
    %v808 = vunpack.c.l.b16 %v232
    %v809 = vunpack.c.h.b16 %v232
    %v810 = vunpack.c.l.b16 %v233
    %v811 = vunpack.c.h.b16 %v233
    %v812 = vunpack.c.l.b16 %v234
    %v813 = vunpack.c.l.b16 %v235
    %v814 = vunpack.c.h.b16 %v235
    %v815 = vunpack.c.l.b16 %v236
    %v816 = vunpack.c.h.b16 %v236
    %v817 = vunpack.c.l.b16 %v237
    %v818 = vunpack.c.h.b16 %v237
    %v819 = vunpack.c.l.b16 %v238
    %v820 = vunpack.c.l.b16 %v239
    %v821 = vunpack.c.h.b16 %v239
    %v822 = vunpack.c.l.b16 %v240
    %v823 = vunpack.c.h.b16 %v240
    %v824 = vunpack.c.l.b16 %v241
    %v825 = vunpack.c.h.b16 %v241
    %v826 = vunpack.c.l.b16 %v242
    %v827 = vunpack.c.l.b16 %v243
    %v828 = vunpack.c.h.b16 %v243
    %v829 = vunpack.c.l.b16 %v244
    %v830 = vunpack.c.h.b16 %v244
    %v831 = vunpack.c.l.b16 %v245
    %v832 = vunpack.c.h.b16 %v245
    %v833 = vunpack.c.l.b16 %v246
    %v834 = vunpack.c.l.b16 %v247
    %v835 = vunpack.c.h.b16 %v247
    %v836 = vunpack.c.l.b16 %v248
    %v837 = vunpack.c.h.b16 %v248
    %v838 = vunpack.c.l.b16 %v249
    %v839 = vunpack.c.h.b16 %v249
    %v840 = vunpack.c.l.b16 %v250
    %v841 = vunpack.c.l.b16 %v251
    %v842 = vunpack.c.h.b16 %v251
    %v843 = vunpack.c.l.b16 %v252
    %v844 = vunpack.c.h.b16 %v252
    %v845 = vunpack.c.l.b16 %v253
    %v846 = vunpack.c.h.b16 %v253
    %v847 = vunpack.c.l.b16 %v254
    %v848 = vunpack.c.l.b16 %v255
    %v849 = vunpack.c.h.b16 %v255
    %v850 = vunpack.c.l.b16 %v256
    %v851 = vunpack.c.h.b16 %v256
    %v852 = vunpack.c.l.b16 %v257
    %v853 = vunpack.c.h.b16 %v257
    %v854 = vunpack.c.l.b16 %v258
    %v855 = vunpack.c.l.b16 %v259
    %v856 = vunpack.c.h.b16 %v259
    %v857 = vunpack.c.l.b16 %v260
    %v858 = vunpack.c.h.b16 %v260
    %v859 = vunpack.c.l.b16 %v261
    %v860 = vunpack.c.h.b16 %v261
    %v861 = vunpack.c.l.b16 %v262
    %v862 = vunpack.c.l.b16 %v263
    %v863 = vunpack.c.h.b16 %v263
    %v864 = vunpack.c.l.b16 %v264
    %v865 = vunpack.c.h.b16 %v264
    %v866 = vunpack.c.l.b16 %v265
    %v867 = vunpack.c.h.b16 %v265
    %v868 = vunpack.c.l.b16 %v266
    %v869 = vunpack.c.l.b16 %v267
    %v870 = vunpack.c.h.b16 %v267
    %v871 = vunpack.c.l.b16 %v268
    %v872 = vunpack.c.h.b16 %v268
    %v873 = vunpack.c.l.b16 %v269
    %v874 = vunpack.c.h.b16 %v269
    %v875 = vunpack.c.l.b16 %v270
    %v876 = vunpack.c.l.b16 %v271
    %v877 = vunpack.c.h.b16 %v271
    %v878 = vunpack.c.l.b16 %v272
    %v879 = vunpack.c.h.b16 %v272
    %v880 = vunpack.c.l.b16 %v273
    %v881 = vunpack.c.h.b16 %v273
    %v882 = vunpack.c.l.b16 %v274
    %v883 = vunpack.c.l.b16 %v275
    %v884 = vunpack.c.h.b16 %v275
    %v885 = vunpack.c.l.b16 %v276
    %v886 = vunpack.c.h.b16 %v276
    %v887 = vunpack.c.l.b16 %v277
    %v888 = vunpack.c.h.b16 %v277
    %v889 = vunpack.c.l.b16 %v278
    %v890 = vunpack.c.l.b16 %v279
    %v891 = vunpack.c.h.b16 %v279
    %v892 = vunpack.c.l.b16 %v280
    %v893 = vunpack.c.h.b16 %v280
    %v894 = vunpack.c.l.b16 %v281
    %v895 = vunpack.c.h.b16 %v281
    %v896 = vunpack.c.l.b16 %v282
    %v897 = vunpack.c.l.b16 %v283
    %v898 = vunpack.c.h.b16 %v283
    %v899 = vunpack.c.l.b16 %v284
    %v900 = vunpack.c.h.b16 %v284
    %v901 = vunpack.c.l.b16 %v285
    %v902 = vunpack.c.h.b16 %v285
    %v903 = vunpack.c.l.b16 %v286
    %v904 = vunpack.c.l.b16 %v287
    %v905 = vunpack.c.h.b16 %v287
    %v906 = vunpack.c.l.b16 %v288
    %v907 = vunpack.c.h.b16 %v288
    %v908 = vunpack.c.l.b16 %v289
    %v909 = vunpack.c.h.b16 %v289
    %v910 = vunpack.c.l.b16 %v290
    %v911 = vunpack.c.l.b16 %v291
    %v912 = vunpack.c.h.b16 %v291
    %v913 = vunpack.c.l.b16 %v292
    %v914 = vunpack.c.h.b16 %v292
    %v915 = vunpack.c.l.b16 %v293
    %v916 = vunpack.c.h.b16 %v293
    %v917 = vunpack.c.l.b16 %v294
    %v918 = vunpack.c.l.b16 %v295
    %v919 = vunpack.c.h.b16 %v295
    %v920 = vunpack.c.l.b16 %v296
    %v921 = vunpack.c.h.b16 %v296
    %v922 = vunpack.c.l.b16 %v297
    %v923 = vunpack.c.h.b16 %v297
    %v924 = vunpack.c.l.b16 %v298
    %v925 = vunpack.c.l.b16 %v299
    %v926 = vunpack.c.h.b16 %v299
    %v927 = vunpack.c.l.b16 %v300
    %v928 = vunpack.c.h.b16 %v300
    %v929 = vunpack.c.l.b16 %v301
    %v930 = vunpack.c.h.b16 %v301
    %v931 = vunpack.c.l.b16 %v302
    %v932 = vunpack.c.l.b16 %v303
    %v933 = vunpack.c.h.b16 %v303
    %v934 = vunpack.c.l.b16 %v304
    %v935 = vunpack.c.h.b16 %v304
    %v936 = vunpack.c.l.b16 %v305
    %v937 = vunpack.c.h.b16 %v305
    %v938 = vunpack.c.l.b16 %v306
    %v939 = vunpack.c.l.b16 %v307
    %v940 = vunpack.c.h.b16 %v307
    %v941 = vunpack.c.l.b16 %v308
    %v942 = vunpack.c.h.b16 %v308
    %v943 = vunpack.c.l.b16 %v309
    %v944 = vunpack.c.h.b16 %v309
    %v945 = vunpack.c.l.b16 %v310
    %v946 = vunpack.c.l.b16 %v311
    %v947 = vunpack.c.h.b16 %v311
    %v948 = vunpack.c.l.b16 %v312
    %v949 = vunpack.c.h.b16 %v312
    %v950 = vunpack.c.l.b16 %v313
    %v951 = vunpack.c.h.b16 %v313
    %v952 = vunpack.c.l.b16 %v314
    %v953 = vunpack.c.l.b16 %v315
    %v954 = vunpack.c.h.b16 %v315
    %v955 = vunpack.c.l.b16 %v316
    %v956 = vunpack.c.h.b16 %v316
    %v957 = vunpack.c.l.b16 %v317
    %v958 = vunpack.c.h.b16 %v317
    %v959 = vunpack.c.l.b16 %v318
    %v960 = vunpack.c.l.b16 %v319
    %v961 = vunpack.c.h.b16 %v319
    %v962 = vunpack.c.l.b16 %v320
    %v963 = vunpack.c.h.b16 %v320
    %v964 = vunpack.c.l.b16 %v321
    %v965 = vunpack.c.h.b16 %v321
    %v966 = vunpack.c.l.b16 %v322
    %v967 = vunpack.c.l.b16 %v323
    %v968 = vunpack.c.h.b16 %v323
    %v969 = vunpack.c.l.b16 %v324
    %v970 = vunpack.c.h.b16 %v324
    %v971 = vunpack.c.l.b16 %v325
    %v972 = vunpack.c.h.b16 %v325
    %v973 = vunpack.c.l.b16 %v326
    %v974 = vunpack.c.l.b16 %v327
    %v975 = vunpack.c.h.b16 %v327
    %v976 = vunpack.c.l.b16 %v328
    %v977 = vunpack.c.h.b16 %v328
    %v978 = vunpack.c.l.b16 %v329
    %v979 = vunpack.c.h.b16 %v329
    %v980 = vunpack.c.l.b16 %v330
    %v981 = vunpack.c.l.b16 %v331
    %v982 = vunpack.c.h.b16 %v331
    %v983 = vunpack.c.l.b16 %v332
    %v984 = vunpack.c.h.b16 %v332
    %v985 = vunpack.c.l.b16 %v333
    %v986 = vunpack.c.h.b16 %v333
    %v987 = vunpack.c.l.b16 %v334
    %v988 = vunpack.c.l.b16 %v335
    %v989 = vunpack.c.h.b16 %v335
    %v990 = vunpack.c.l.b16 %v336
    %v991 = vunpack.c.h.b16 %v336
    %v992 = vunpack.c.l.b16 %v337
    %v993 = vunpack.c.h.b16 %v337
    %v994 = vunpack.c.l.b16 %v338
    %v995 = vunpack.c.l.b16 %v339
    %v996 = vunpack.c.h.b16 %v339
    %v997 = vunpack.c.l.b16 %v340
    %v998 = vunpack.c.h.b16 %v340
    %v999 = vunpack.c.l.b16 %v341
    %v1000 = vunpack.c.h.b16 %v341
    %v1001 = vunpack.c.l.b16 %v342
    %v1002 = vunpack.c.l.b16 %v343
    %v1003 = vunpack.c.h.b16 %v343
    %v1004 = vunpack.c.l.b16 %v344
    %v1005 = vunpack.c.h.b16 %v344
    %v1006 = vunpack.c.l.b16 %v345
    %v1007 = vunpack.c.h.b16 %v345
    %v1008 = vunpack.c.l.b16 %v346
    %v1009 = vunpack.c.l.b16 %v347
    %v1010 = vunpack.c.h.b16 %v347
    %v1011 = vunpack.c.l.b16 %v348
    %v1012 = vunpack.c.h.b16 %v348
    %v1013 = vunpack.c.l.b16 %v349
    %v1014 = vunpack.c.h.b16 %v349
    %v1015 = vunpack.c.l.b16 %v350
    %v1016 = vunpack.c.l.b16 %v351
    %v1017 = vunpack.c.h.b16 %v351
    %v1018 = vunpack.c.l.b16 %v352
    %v1019 = vunpack.c.h.b16 %v352
    %v1020 = vunpack.c.l.b16 %v353
    %v1021 = vunpack.c.h.b16 %v353
    %v1022 = vunpack.c.l.b16 %v354
    %v1023 = vunpack.c.l.b16 %v355
    %v1024 = vunpack.c.h.b16 %v355
    %v1025 = vunpack.c.l.b16 %v356
    %v1026 = vunpack.c.h.b16 %v356
    %v1027 = vunpack.c.l.b16 %v357
    %v1028 = vunpack.c.h.b16 %v357
    %v1029 = vunpack.c.l.b16 %v358
    %v1030 = vunpack.c.l.b16 %v359
    %v1031 = vunpack.c.h.b16 %v359
    %v1032 = vunpack.c.l.b16 %v360
    %v1033 = vunpack.c.h.b16 %v360
    %v1034 = vunpack.c.l.b16 %v361
    %v1035 = vunpack.c.h.b16 %v361
    %v1036 = vunpack.c.l.b16 %v362
    %v1037 = vunpack.c.l.b16 %v363
    %v1038 = vunpack.c.h.b16 %v363
    %v1039 = vunpack.c.l.b16 %v364
    %v1040 = vunpack.c.h.b16 %v364
    %v1041 = vunpack.c.l.b16 %v365
    %v1042 = vunpack.c.h.b16 %v365
    %v1043 = vunpack.c.l.b16 %v366
    %v1044 = vunpack.c.l.b16 %v367
    %v1045 = vunpack.c.h.b16 %v367
    %v1046 = vunpack.c.l.b16 %v368
    %v1047 = vunpack.c.h.b16 %v368
    %v1048 = vunpack.c.l.b16 %v369
    %v1049 = vunpack.c.h.b16 %v369
    %v1050 = vunpack.c.l.b16 %v370
    %v1051 = vunpack.c.l.b16 %v371
    %v1052 = vunpack.c.h.b16 %v371
    %v1053 = vunpack.c.l.b16 %v372
    %v1054 = vunpack.c.h.b16 %v372
    %v1055 = vunpack.c.l.b16 %v373
    %v1056 = vunpack.c.h.b16 %v373
    %v1057 = vunpack.c.l.b16 %v374
    %v1058 = vunpack.c.l.b16 %v375
    %v1059 = vunpack.c.h.b16 %v375
    %v1060 = vunpack.c.l.b16 %v376
    %v1061 = vunpack.c.h.b16 %v376
    %v1062 = vunpack.c.l.b16 %v377
    %v1063 = vunpack.c.h.b16 %v377
    %v1064 = vunpack.c.l.b16 %v378
    %v1065 = vunpack.c.l.b16 %v379
    %v1066 = vunpack.c.h.b16 %v379
    %v1067 = vunpack.c.l.b16 %v380
    %v1068 = vunpack.c.h.b16 %v380
    %v1069 = vunpack.c.l.b16 %v381
    %v1070 = vunpack.c.h.b16 %v381
    %v1071 = vunpack.c.l.b16 %v382
    %v1072 = vunpack.c.l.b16 %v383
    %v1073 = vunpack.c.h.b16 %v383
    %v1074 = vunpack.c.l.b16 %v384
    %v1075 = vunpack.c.h.b16 %v384
    %v1076 = vunpack.c.l.b16 %v385
    %v1077 = vunpack.c.h.b16 %v385
    %v1078 = vunpack.c.l.b16 %v386
    %v1079 = vunpack.c.l.b16 %v387
    %v1080 = vunpack.c.h.b16 %v387
    %v1081 = vunpack.c.l.b16 %v388
    %v1082 = vunpack.c.h.b16 %v388
    %v1083 = vunpack.c.l.b16 %v389
    %v1084 = vunpack.c.h.b16 %v389
    %v1085 = vunpack.c.l.b16 %v390
    %v1086 = vunpack.c.l.b16 %v391
    %v1087 = vunpack.c.h.b16 %v391
    %v1088 = vunpack.c.l.b16 %v392
    %v1089 = vunpack.c.h.b16 %v392
    %v1090 = vunpack.c.l.b16 %v393
    %v1091 = vunpack.c.h.b16 %v393
    %v1092 = vunpack.c.l.b16 %v394
    %v1093 = vunpack.c.l.b16 %v395
    %v1094 = vunpack.c.h.b16 %v395
    %v1095 = vunpack.c.l.b16 %v396
    %v1096 = vunpack.c.h.b16 %v396
    %v1097 = vunpack.c.l.b16 %v397
    %v1098 = vunpack.c.h.b16 %v397
    %v1099 = vunpack.c.l.b16 %v398
    %v1100 = vunpack.c.l.b16 %v399
    %v1101 = vunpack.c.h.b16 %v399
    %v1102 = vunpack.c.l.b16 %v400
    %v1103 = vunpack.c.h.b16 %v400
    %v1104 = vunpack.c.l.b16 %v401
    %v1105 = vunpack.c.h.b16 %v401
    %v1106 = vunpack.c.l.b16 %v402
    %v1107 = vunpack.c.l.b16 %v403
    %v1108 = vunpack.c.h.b16 %v403
    %v1109 = vunpack.c.l.b16 %v404
    %v1110 = vunpack.c.h.b16 %v404
    %v1111 = vunpack.c.l.b16 %v405
    %v1112 = vunpack.c.h.b16 %v405
    %v1113 = vunpack.c.l.b16 %v406
    %v1114 = vunpack.c.l.b16 %v407
    %v1115 = vunpack.c.h.b16 %v407
    %v1116 = vunpack.c.l.b16 %v408
    %v1117 = vunpack.c.h.b16 %v408
    %v1118 = vunpack.c.l.b16 %v409
    %v1119 = vunpack.c.h.b16 %v409
    %v1120 = vunpack.c.l.b16 %v410
    %v1121 = vunpack.c.l.b16 %v411
    %v1122 = vunpack.c.h.b16 %v411
    %v1123 = vunpack.c.l.b16 %v412
    %v1124 = vunpack.c.h.b16 %v412
    %v1125 = vunpack.c.l.b16 %v413
    %v1126 = vunpack.c.h.b16 %v413
    %v1127 = vunpack.c.l.b16 %v414
    %v1128 = vunpack.c.l.b16 %v415
    %v1129 = vunpack.c.h.b16 %v415
    %v1130 = vunpack.c.l.b16 %v416
    %v1131 = vunpack.c.h.b16 %v416
    %v1132 = vunpack.c.l.b16 %v417
    %v1133 = vunpack.c.h.b16 %v417
    %v1134 = vunpack.c.l.b16 %v418
    %v1135 = vunpack.c.l.b16 %v419
    %v1136 = vunpack.c.h.b16 %v419
    %v1137 = vunpack.c.l.b16 %v420
    %v1138 = vunpack.c.h.b16 %v420
    %v1139 = vunpack.c.l.b16 %v421
    %v1140 = vunpack.c.h.b16 %v421
    %v1141 = vunpack.c.l.b16 %v422
    %v1142 = vunpack.c.l.b16 %v423
    %v1143 = vunpack.c.h.b16 %v423
    %v1144 = vunpack.c.l.b16 %v424
    %v1145 = vunpack.c.h.b16 %v424
    %v1146 = vunpack.c.l.b16 %v425
    %v1147 = vunpack.c.h.b16 %v425
    %v1148 = vunpack.c.l.b16 %v426
    %v1149 = vunpack.c.l.b16 %v427
    %v1150 = vunpack.c.h.b16 %v427
    %v1151 = vunpack.c.l.b16 %v428
    %v1152 = vunpack.c.h.b16 %v428
    %v1153 = vunpack.c.l.b16 %v429
    %v1154 = vunpack.c.h.b16 %v429
    %v1155 = vunpack.c.l.b16 %v430
    %v1156 = vunpack.c.l.b16 %v431
    %v1157 = vunpack.c.h.b16 %v431
    %v1158 = vunpack.c.l.b16 %v432
    %v1159 = vunpack.c.h.b16 %v432
    %v1160 = vunpack.c.l.b16 %v433
    %v1161 = vunpack.c.h.b16 %v433
    %v1162 = vunpack.c.l.b16 %v434
    %v1163 = vunpack.c.l.b16 %v435
    %v1164 = vunpack.c.h.b16 %v435
    %v1165 = vunpack.c.l.b16 %v436
    %v1166 = vunpack.c.h.b16 %v436
    %v1167 = vunpack.c.l.b16 %v437
    %v1168 = vunpack.c.h.b16 %v437
    %v1169 = vunpack.c.l.b16 %v438
    %v1170 = vunpack.c.l.b16 %v439
    %v1171 = vunpack.c.h.b16 %v439
    %v1172 = vunpack.c.l.b16 %v440
    %v1173 = vunpack.c.h.b16 %v440
    %v1174 = vunpack.c.l.b16 %v441
    %v1175 = vunpack.c.h.b16 %v441
    %v1176 = vunpack.c.l.b16 %v442
    %v1177 = vunpack.c.l.b16 %v443
    %v1178 = vunpack.c.h.b16 %v443
    %v1179 = vunpack.c.l.b16 %v444
    %v1180 = vunpack.c.h.b16 %v444
    %v1181 = vunpack.c.l.b16 %v445
    %v1182 = vunpack.c.h.b16 %v445
    %v1183 = vunpack.c.l.b16 %v446
    %v1184 = vunpack.c.l.b16 %v447
    %v1185 = vunpack.c.h.b16 %v447
    %v1186 = vunpack.c.l.b16 %v448
    %v1187 = vunpack.c.h.b16 %v448
    %v1188 = vunpack.c.l.b16 %v449
    %v1189 = vunpack.c.h.b16 %v449
    %v1190 = vunpack.c.l.b16 %v450
    %v1191 = vunpack.c.l.b16 %v451
    %v1192 = vunpack.c.h.b16 %v451
    %v1193 = vunpack.c.l.b16 %v452
    %v1194 = vunpack.c.h.b16 %v452
    %v1195 = vunpack.c.l.b16 %v453
    %v1196 = vunpack.c.h.b16 %v453
    %v1197 = vunpack.c.l.b16 %v454
    %v1198 = vunpack.c.l.b16 %v455
    %v1199 = vunpack.c.h.b16 %v455
    %v1200 = vunpack.c.l.b16 %v456
    %v1201 = vunpack.c.h.b16 %v456
    %v1202 = vunpack.c.l.b16 %v457
    %v1203 = vunpack.c.h.b16 %v457
    %v1204 = vunpack.c.l.b16 %v458
    %v1205 = vunpack.c.l.b16 %v459
    %v1206 = vunpack.c.h.b16 %v459
    %v1207 = vunpack.c.l.b16 %v460
    %v1208 = vunpack.c.h.b16 %v460
    %v1209 = vunpack.c.l.b16 %v461
    %v1210 = vunpack.c.h.b16 %v461
    %v1211 = vunpack.c.l.b16 %v462
    %v1212 = vunpack.c.l.b16 %v463
    %v1213 = vunpack.c.h.b16 %v463
    %v1214 = vunpack.c.l.b16 %v464
    %v1215 = vunpack.c.h.b16 %v464
    %v1216 = vunpack.c.l.b16 %v465
    %v1217 = vunpack.c.h.b16 %v465
    %v1218 = vunpack.c.l.b16 %v466
    %v1219 = vunpack.c.l.b16 %v467
    %v1220 = vunpack.c.h.b16 %v467
    %v1221 = vunpack.c.l.b16 %v468
    %v1222 = vunpack.c.h.b16 %v468
    %v1223 = vunpack.c.l.b16 %v469
    %v1224 = vunpack.c.h.b16 %v469
    %v1225 = vunpack.c.l.b16 %v470
    %v1226 = vpack.c.b16 %v785, %v778
    %v1227 = vpack.c.b16 %v786, %v779
    %v1228 = vpack.c.b16 %v787, %v780
    %v1229 = vpack.c.b16 %v788, %v781
    %v1230 = vpack.c.b16 %v789, %v782
    %v1231 = vpack.c.b16 %v790, %v783
    %v1232 = vpack.c.b16 %v791, %v784
    %v1233 = vpack.c.b16 %v799, %v792
    %v1234 = vpack.c.b16 %v800, %v793
    %v1235 = vpack.c.b16 %v801, %v794
    %v1236 = vpack.c.b16 %v802, %v795
    %v1237 = vpack.c.b16 %v803, %v796
    %v1238 = vpack.c.b16 %v804, %v797
    %v1239 = vpack.c.b16 %v805, %v798
    %v1240 = vpack.c.b16 %v813, %v806
    %v1241 = vpack.c.b16 %v814, %v807
    %v1242 = vpack.c.b16 %v815, %v808
    %v1243 = vpack.c.b16 %v816, %v809
    %v1244 = vpack.c.b16 %v817, %v810
    %v1245 = vpack.c.b16 %v818, %v811
    %v1246 = vpack.c.b16 %v819, %v812
    %v1247 = vpack.c.b16 %v827, %v820
    %v1248 = vpack.c.b16 %v828, %v821
    %v1249 = vpack.c.b16 %v829, %v822
    %v1250 = vpack.c.b16 %v830, %v823
    %v1251 = vpack.c.b16 %v831, %v824
    %v1252 = vpack.c.b16 %v832, %v825
    %v1253 = vpack.c.b16 %v833, %v826
    %v1254 = vpack.c.b16 %v841, %v834
    %v1255 = vpack.c.b16 %v842, %v835
    %v1256 = vpack.c.b16 %v843, %v836
    %v1257 = vpack.c.b16 %v844, %v837
    %v1258 = vpack.c.b16 %v845, %v838
    %v1259 = vpack.c.b16 %v846, %v839
    %v1260 = vpack.c.b16 %v847, %v840
    %v1261 = vpack.c.b16 %v855, %v848
    %v1262 = vpack.c.b16 %v856, %v849
    %v1263 = vpack.c.b16 %v857, %v850
    %v1264 = vpack.c.b16 %v858, %v851
    %v1265 = vpack.c.b16 %v859, %v852
    %v1266 = vpack.c.b16 %v860, %v853
    %v1267 = vpack.c.b16 %v861, %v854
    %v1268 = vpack.c.b16 %v869, %v862
    %v1269 = vpack.c.b16 %v870, %v863
    %v1270 = vpack.c.b16 %v871, %v864
    %v1271 = vpack.c.b16 %v872, %v865
    %v1272 = vpack.c.b16 %v873, %v866
    %v1273 = vpack.c.b16 %v874, %v867
    %v1274 = vpack.c.b16 %v875, %v868
    %v1275 = vpack.c.b16 %v883, %v876
    %v1276 = vpack.c.b16 %v884, %v877
    %v1277 = vpack.c.b16 %v885, %v878
    %v1278 = vpack.c.b16 %v886, %v879
    %v1279 = vpack.c.b16 %v887, %v880
    %v1280 = vpack.c.b16 %v888, %v881
    %v1281 = vpack.c.b16 %v889, %v882
    %v1282 = vpack.c.b16 %v897, %v890
    %v1283 = vpack.c.b16 %v898, %v891
    %v1284 = vpack.c.b16 %v899, %v892
    %v1285 = vpack.c.b16 %v900, %v893
    %v1286 = vpack.c.b16 %v901, %v894
    %v1287 = vpack.c.b16 %v902, %v895
    %v1288 = vpack.c.b16 %v903, %v896
    %v1289 = vpack.c.b16 %v911, %v904
    %v1290 = vpack.c.b16 %v912, %v905
    %v1291 = vpack.c.b16 %v913, %v906
    %v1292 = vpack.c.b16 %v914, %v907
    %v1293 = vpack.c.b16 %v915, %v908
    %v1294 = vpack.c.b16 %v916, %v909
    %v1295 = vpack.c.b16 %v917, %v910
    %v1296 = vpack.c.b16 %v925, %v918
    %v1297 = vpack.c.b16 %v926, %v919
    %v1298 = vpack.c.b16 %v927, %v920
    %v1299 = vpack.c.b16 %v928, %v921
    %v1300 = vpack.c.b16 %v929, %v922
    %v1301 = vpack.c.b16 %v930, %v923
    %v1302 = vpack.c.b16 %v931, %v924
    %v1303 = vpack.c.b16 %v939, %v932
    %v1304 = vpack.c.b16 %v940, %v933
    %v1305 = vpack.c.b16 %v941, %v934
    %v1306 = vpack.c.b16 %v942, %v935
    %v1307 = vpack.c.b16 %v943, %v936
    %v1308 = vpack.c.b16 %v944, %v937
    %v1309 = vpack.c.b16 %v945, %v938
    %v1310 = vpack.c.b16 %v953, %v946
    %v1311 = vpack.c.b16 %v954, %v947
    %v1312 = vpack.c.b16 %v955, %v948
    %v1313 = vpack.c.b16 %v956, %v949
    %v1314 = vpack.c.b16 %v957, %v950
    %v1315 = vpack.c.b16 %v958, %v951
    %v1316 = vpack.c.b16 %v959, %v952
    %v1317 = vpack.c.b16 %v967, %v960
    %v1318 = vpack.c.b16 %v968, %v961
    %v1319 = vpack.c.b16 %v969, %v962
    %v1320 = vpack.c.b16 %v970, %v963
    %v1321 = vpack.c.b16 %v971, %v964
    %v1322 = vpack.c.b16 %v972, %v965
    %v1323 = vpack.c.b16 %v973, %v966
    %v1324 = vpack.c.b16 %v981, %v974
    %v1325 = vpack.c.b16 %v982, %v975
    %v1326 = vpack.c.b16 %v983, %v976
    %v1327 = vpack.c.b16 %v984, %v977
    %v1328 = vpack.c.b16 %v985, %v978
    %v1329 = vpack.c.b16 %v986, %v979
    %v1330 = vpack.c.b16 %v987, %v980
    %v1331 = vpack.c.b16 %v995, %v988
    %v1332 = vpack.c.b16 %v996, %v989
    %v1333 = vpack.c.b16 %v997, %v990
    %v1334 = vpack.c.b16 %v998, %v991
    %v1335 = vpack.c.b16 %v999, %v992
    %v1336 = vpack.c.b16 %v1000, %v993
    %v1337 = vpack.c.b16 %v1001, %v994
    %v1338 = vpack.c.b16 %v1009, %v1002
    %v1339 = vpack.c.b16 %v1010, %v1003
    %v1340 = vpack.c.b16 %v1011, %v1004
    %v1341 = vpack.c.b16 %v1012, %v1005
    %v1342 = vpack.c.b16 %v1013, %v1006
    %v1343 = vpack.c.b16 %v1014, %v1007
    %v1344 = vpack.c.b16 %v1015, %v1008
    %v1345 = vpack.c.b16 %v1023, %v1016
    %v1346 = vpack.c.b16 %v1024, %v1017
    %v1347 = vpack.c.b16 %v1025, %v1018
    %v1348 = vpack.c.b16 %v1026, %v1019
    %v1349 = vpack.c.b16 %v1027, %v1020
    %v1350 = vpack.c.b16 %v1028, %v1021
    %v1351 = vpack.c.b16 %v1029, %v1022
    %v1352 = vpack.c.b16 %v1037, %v1030
    %v1353 = vpack.c.b16 %v1038, %v1031
    %v1354 = vpack.c.b16 %v1039, %v1032
    %v1355 = vpack.c.b16 %v1040, %v1033
    %v1356 = vpack.c.b16 %v1041, %v1034
    %v1357 = vpack.c.b16 %v1042, %v1035
    %v1358 = vpack.c.b16 %v1043, %v1036
    %v1359 = vpack.c.b16 %v1051, %v1044
    %v1360 = vpack.c.b16 %v1052, %v1045
    %v1361 = vpack.c.b16 %v1053, %v1046
    %v1362 = vpack.c.b16 %v1054, %v1047
    %v1363 = vpack.c.b16 %v1055, %v1048
    %v1364 = vpack.c.b16 %v1056, %v1049
    %v1365 = vpack.c.b16 %v1057, %v1050
    %v1366 = vpack.c.b16 %v1065, %v1058
    %v1367 = vpack.c.b16 %v1066, %v1059
    %v1368 = vpack.c.b16 %v1067, %v1060
    %v1369 = vpack.c.b16 %v1068, %v1061
    %v1370 = vpack.c.b16 %v1069, %v1062
    %v1371 = vpack.c.b16 %v1070, %v1063
    %v1372 = vpack.c.b16 %v1071, %v1064
    %v1373 = vpack.c.b16 %v1079, %v1072
    %v1374 = vpack.c.b16 %v1080, %v1073
    %v1375 = vpack.c.b16 %v1081, %v1074
    %v1376 = vpack.c.b16 %v1082, %v1075
    %v1377 = vpack.c.b16 %v1083, %v1076
    %v1378 = vpack.c.b16 %v1084, %v1077
    %v1379 = vpack.c.b16 %v1085, %v1078
    %v1380 = vpack.c.b16 %v1093, %v1086
    %v1381 = vpack.c.b16 %v1094, %v1087
    %v1382 = vpack.c.b16 %v1095, %v1088
    %v1383 = vpack.c.b16 %v1096, %v1089
    %v1384 = vpack.c.b16 %v1097, %v1090
    %v1385 = vpack.c.b16 %v1098, %v1091
    %v1386 = vpack.c.b16 %v1099, %v1092
    %v1387 = vpack.c.b16 %v1107, %v1100
    %v1388 = vpack.c.b16 %v1108, %v1101
    %v1389 = vpack.c.b16 %v1109, %v1102
    %v1390 = vpack.c.b16 %v1110, %v1103
    %v1391 = vpack.c.b16 %v1111, %v1104
    %v1392 = vpack.c.b16 %v1112, %v1105
    %v1393 = vpack.c.b16 %v1113, %v1106
    %v1394 = vpack.c.b16 %v1121, %v1114
    %v1395 = vpack.c.b16 %v1122, %v1115
    %v1396 = vpack.c.b16 %v1123, %v1116
    %v1397 = vpack.c.b16 %v1124, %v1117
    %v1398 = vpack.c.b16 %v1125, %v1118
    %v1399 = vpack.c.b16 %v1126, %v1119
    %v1400 = vpack.c.b16 %v1127, %v1120
    %v1401 = vpack.c.b16 %v1135, %v1128
    %v1402 = vpack.c.b16 %v1136, %v1129
    %v1403 = vpack.c.b16 %v1137, %v1130
    %v1404 = vpack.c.b16 %v1138, %v1131
    %v1405 = vpack.c.b16 %v1139, %v1132
    %v1406 = vpack.c.b16 %v1140, %v1133
    %v1407 = vpack.c.b16 %v1141, %v1134
    %v1408 = vpack.c.b16 %v1149, %v1142
    %v1409 = vpack.c.b16 %v1150, %v1143
    %v1410 = vpack.c.b16 %v1151, %v1144
    %v1411 = vpack.c.b16 %v1152, %v1145
    %v1412 = vpack.c.b16 %v1153, %v1146
    %v1413 = vpack.c.b16 %v1154, %v1147
    %v1414 = vpack.c.b16 %v1155, %v1148
    %v1415 = vpack.c.b16 %v1163, %v1156
    %v1416 = vpack.c.b16 %v1164, %v1157
    %v1417 = vpack.c.b16 %v1165, %v1158
    %v1418 = vpack.c.b16 %v1166, %v1159
    %v1419 = vpack.c.b16 %v1167, %v1160
    %v1420 = vpack.c.b16 %v1168, %v1161
    %v1421 = vpack.c.b16 %v1169, %v1162
    %v1422 = vpack.c.b16 %v1177, %v1170
    %v1423 = vpack.c.b16 %v1178, %v1171
    %v1424 = vpack.c.b16 %v1179, %v1172
    %v1425 = vpack.c.b16 %v1180, %v1173
    %v1426 = vpack.c.b16 %v1181, %v1174
    %v1427 = vpack.c.b16 %v1182, %v1175
    %v1428 = vpack.c.b16 %v1183, %v1176
    %v1429 = vpack.c.b16 %v1191, %v1184
    %v1430 = vpack.c.b16 %v1192, %v1185
    %v1431 = vpack.c.b16 %v1193, %v1186
    %v1432 = vpack.c.b16 %v1194, %v1187
    %v1433 = vpack.c.b16 %v1195, %v1188
    %v1434 = vpack.c.b16 %v1196, %v1189
    %v1435 = vpack.c.b16 %v1197, %v1190
    %v1436 = vpack.c.b16 %v1205, %v1198
    %v1437 = vpack.c.b16 %v1206, %v1199
    %v1438 = vpack.c.b16 %v1207, %v1200
    %v1439 = vpack.c.b16 %v1208, %v1201
    %v1440 = vpack.c.b16 %v1209, %v1202
    %v1441 = vpack.c.b16 %v1210, %v1203
    %v1442 = vpack.c.b16 %v1211, %v1204
    %v1443 = vpack.c.b16 %v1219, %v1212
    %v1444 = vpack.c.b16 %v1220, %v1213
    %v1445 = vpack.c.b16 %v1221, %v1214
    %v1446 = vpack.c.b16 %v1222, %v1215
    %v1447 = vpack.c.b16 %v1223, %v1216
    %v1448 = vpack.c.b16 %v1224, %v1217
    %v1449 = vpack.c.b16 %v1225, %v1218
    %1674 = vmatprep.subr.bf16.mxu0 %v1227
    %1675 = vmatpush1.bf16.msra.mxu0 %v1226
    %1676 = vmatprep.subr.bf16.mxu0 %v1234
    %1677 = vmatpush1.bf16.msra.mxu0 %v1233
    %1678 = vmatprep.subr.bf16.mxu0 %v1241
    %1679 = vmatpush1.bf16.msra.mxu0 %v1240
    %1680 = vmatprep.subr.bf16.mxu0 %v1248
    %1681 = vmatpush1.bf16.msra.mxu0 %v1247
    %1682 = vmatprep.subr.bf16.mxu0 %v1255
    %1683 = vmatpush1.bf16.msra.mxu0 %v1254
    %1684 = vmatprep.subr.bf16.mxu0 %v1262
    %1685 = vmatpush1.bf16.msra.mxu0 %v1261
    %1686 = vmatprep.subr.bf16.mxu0 %v1269
    %1687 = vmatpush1.bf16.msra.mxu0 %v1268
    %1688 = vmatprep.subr.bf16.mxu0 %v1276
    %1689 = vmatpush1.bf16.msra.mxu0 %v1275
    %1690 = vmatprep.subr.bf16.mxu0 %v1283
    %1691 = vmatpush1.bf16.msra.mxu0 %v1282
    %1692 = vmatprep.subr.bf16.mxu0 %v1290
    %1693 = vmatpush1.bf16.msra.mxu0 %v1289
    %1694 = vmatprep.subr.bf16.mxu0 %v1297
    %1695 = vmatpush1.bf16.msra.mxu0 %v1296
    %1696 = vmatprep.subr.bf16.mxu0 %v1304
    %1697 = vmatpush1.bf16.msra.mxu0 %v1303
    %1698 = vmatprep.subr.bf16.mxu0 %v1311
    %1699 = vmatpush1.bf16.msra.mxu0 %v1310
    %1700 = vmatprep.subr.bf16.mxu0 %v1318
    %1701 = vmatpush1.bf16.msra.mxu0 %v1317
    %1702 = vmatprep.subr.bf16.mxu0 %v1325
    %1703 = vmatpush1.bf16.msra.mxu0 %v1324
    %1704 = vmatprep.subr.bf16.mxu0 %v1332
    %1705 = vmatpush1.bf16.msra.mxu0 %v1331
    %1706 = vmatprep.mubr.bf16.mxu0 %v515
    %1707 = vmatmul.mubr.bf16.gmra.mrb[0].mxu0 %v514
    %v1708 = vpop.f32.mrb[0].mxu0
    %v1709 = vadd.f32 %v476, %v1708
    %v1710 = vpop.f32.mrb[0].mxu0
    %v1711 = vadd.f32 %v480, %v1710
    %v1712 = vpop.f32.mrb[0].mxu0
    %v1713 = vpop.f32.mrb[0].mxu0
    %1714 = vdwg.mxu0
    %1715 = vmatprep.subr.bf16.mxu0 %v1339
    %1716 = vmatpush1.bf16.msra.mxu0 %v1338
    %1717 = vmatprep.subr.bf16.mxu0 %v1346
    %1718 = vmatpush1.bf16.msra.mxu0 %v1345
    %1719 = vmatprep.subr.bf16.mxu0 %v1353
    %1720 = vmatpush1.bf16.msra.mxu0 %v1352
    %1721 = vmatprep.subr.bf16.mxu0 %v1360
    %1722 = vmatpush1.bf16.msra.mxu0 %v1359
    %1723 = vmatprep.subr.bf16.mxu0 %v1367
    %1724 = vmatpush1.bf16.msra.mxu0 %v1366
    %1725 = vmatprep.subr.bf16.mxu0 %v1374
    %1726 = vmatpush1.bf16.msra.mxu0 %v1373
    %1727 = vmatprep.subr.bf16.mxu0 %v1381
    %1728 = vmatpush1.bf16.msra.mxu0 %v1380
    %1729 = vmatprep.subr.bf16.mxu0 %v1388
    %1730 = vmatpush1.bf16.msra.mxu0 %v1387
    %1731 = vmatprep.subr.bf16.mxu0 %v1395
    %1732 = vmatpush1.bf16.msra.mxu0 %v1394
    %1733 = vmatprep.subr.bf16.mxu0 %v1402
    %1734 = vmatpush1.bf16.msra.mxu0 %v1401
    %1735 = vmatprep.subr.bf16.mxu0 %v1409
    %1736 = vmatpush1.bf16.msra.mxu0 %v1408
    %1737 = vmatprep.subr.bf16.mxu0 %v1416
    %1738 = vmatpush1.bf16.msra.mxu0 %v1415
    %1739 = vmatprep.subr.bf16.mxu0 %v1423
    %1740 = vmatpush1.bf16.msra.mxu0 %v1422
    %1741 = vmatprep.subr.bf16.mxu0 %v1430
    %1742 = vmatpush1.bf16.msra.mxu0 %v1429
    %1743 = vmatprep.subr.bf16.mxu0 %v1437
    %1744 = vmatpush1.bf16.msra.mxu0 %v1436
    %1745 = vmatprep.subr.bf16.mxu0 %v1444
    %1746 = vmatpush1.bf16.msra.mxu0 %v1443
    %1747 = vmatprep.mubr.bf16.mxu0 %v517
    %1748 = vmatmul.mubr.bf16.gmra.mrb[0].mxu0 %v516
    %v1749 = vpop.f32.mrb[0].mxu0
    %v1750 = vadd.f32 %v1709, %v1749
    %v1751 = vpop.f32.mrb[0].mxu0
    %v1752 = vadd.f32 %v1711, %v1751
    %v1753 = vpop.f32.mrb[0].mxu0
    %v1754 = vpop.f32.mrb[0].mxu0
    %1755 = vdwg.mxu0
    %1756 = vmatprep.subr.bf16.mxu0 %v1229
    %1757 = vmatpush1.bf16.msra.mxu0 %v1228
    %1758 = vmatprep.subr.bf16.mxu0 %v1236
    %1759 = vmatpush1.bf16.msra.mxu0 %v1235
    %1760 = vmatprep.subr.bf16.mxu0 %v1243
    %1761 = vmatpush1.bf16.msra.mxu0 %v1242
    %1762 = vmatprep.subr.bf16.mxu0 %v1250
    %1763 = vmatpush1.bf16.msra.mxu0 %v1249
    %1764 = vmatprep.subr.bf16.mxu0 %v1257
    %1765 = vmatpush1.bf16.msra.mxu0 %v1256
    %1766 = vmatprep.subr.bf16.mxu0 %v1264
    %1767 = vmatpush1.bf16.msra.mxu0 %v1263
    %1768 = vmatprep.subr.bf16.mxu0 %v1271
    %1769 = vmatpush1.bf16.msra.mxu0 %v1270
    %1770 = vmatprep.subr.bf16.mxu0 %v1278
    %1771 = vmatpush1.bf16.msra.mxu0 %v1277
    %1772 = vmatprep.subr.bf16.mxu0 %v1285
    %1773 = vmatpush1.bf16.msra.mxu0 %v1284
    %1774 = vmatprep.subr.bf16.mxu0 %v1292
    %1775 = vmatpush1.bf16.msra.mxu0 %v1291
    %1776 = vmatprep.subr.bf16.mxu0 %v1299
    %1777 = vmatpush1.bf16.msra.mxu0 %v1298
    %1778 = vmatprep.subr.bf16.mxu0 %v1306
    %1779 = vmatpush1.bf16.msra.mxu0 %v1305
    %1780 = vmatprep.subr.bf16.mxu0 %v1313
    %1781 = vmatpush1.bf16.msra.mxu0 %v1312
    %1782 = vmatprep.subr.bf16.mxu0 %v1320
    %1783 = vmatpush1.bf16.msra.mxu0 %v1319
    %1784 = vmatprep.subr.bf16.mxu0 %v1327
    %1785 = vmatpush1.bf16.msra.mxu0 %v1326
    %1786 = vmatprep.subr.bf16.mxu0 %v1334
    %1787 = vmatpush1.bf16.msra.mxu0 %v1333
    %1788 = vmatprep.mubr.bf16.mxu0 %v515
    %1789 = vmatmul.mubr.bf16.gmra.mrb[0].mxu0 %v514
    %v1790 = vpop.f32.mrb[0].mxu0
    %v1791 = vadd.f32 %v484, %v1790
    %v1792 = vpop.f32.mrb[0].mxu0
    %v1793 = vadd.f32 %v488, %v1792
    %v1794 = vpop.f32.mrb[0].mxu0
    %v1795 = vpop.f32.mrb[0].mxu0
    %1796 = vdwg.mxu0
    %1797 = vmatprep.subr.bf16.mxu0 %v1341
    %1798 = vmatpush1.bf16.msra.mxu0 %v1340
    %1799 = vmatprep.subr.bf16.mxu0 %v1348
    %1800 = vmatpush1.bf16.msra.mxu0 %v1347
    %1801 = vmatprep.subr.bf16.mxu0 %v1355
    %1802 = vmatpush1.bf16.msra.mxu0 %v1354
    %1803 = vmatprep.subr.bf16.mxu0 %v1362
    %1804 = vmatpush1.bf16.msra.mxu0 %v1361
    %1805 = vmatprep.subr.bf16.mxu0 %v1369
    %1806 = vmatpush1.bf16.msra.mxu0 %v1368
    %1807 = vmatprep.subr.bf16.mxu0 %v1376
    %1808 = vmatpush1.bf16.msra.mxu0 %v1375
    %1809 = vmatprep.subr.bf16.mxu0 %v1383
    %1810 = vmatpush1.bf16.msra.mxu0 %v1382
    %1811 = vmatprep.subr.bf16.mxu0 %v1390
    %1812 = vmatpush1.bf16.msra.mxu0 %v1389
    %1813 = vmatprep.subr.bf16.mxu0 %v1397
    %1814 = vmatpush1.bf16.msra.mxu0 %v1396
    %1815 = vmatprep.subr.bf16.mxu0 %v1404
    %1816 = vmatpush1.bf16.msra.mxu0 %v1403
    %1817 = vmatprep.subr.bf16.mxu0 %v1411
    %1818 = vmatpush1.bf16.msra.mxu0 %v1410
    %1819 = vmatprep.subr.bf16.mxu0 %v1418
    %1820 = vmatpush1.bf16.msra.mxu0 %v1417
    %1821 = vmatprep.subr.bf16.mxu0 %v1425
    %1822 = vmatpush1.bf16.msra.mxu0 %v1424
    %1823 = vmatprep.subr.bf16.mxu0 %v1432
    %1824 = vmatpush1.bf16.msra.mxu0 %v1431
    %1825 = vmatprep.subr.bf16.mxu0 %v1439
    %1826 = vmatpush1.bf16.msra.mxu0 %v1438
    %1827 = vmatprep.subr.bf16.mxu0 %v1446
    %1828 = vmatpush1.bf16.msra.mxu0 %v1445
    %1829 = vmatprep.mubr.bf16.mxu0 %v517
    %1830 = vmatmul.mubr.bf16.gmra.mrb[0].mxu0 %v516
    %v1831 = vpop.f32.mrb[0].mxu0
    %v1832 = vadd.f32 %v1791, %v1831
    %v1833 = vpop.f32.mrb[0].mxu0
    %v1834 = vadd.f32 %v1793, %v1833
    %v1835 = vpop.f32.mrb[0].mxu0
    %v1836 = vpop.f32.mrb[0].mxu0
    %1837 = vdwg.mxu0
    %1838 = vmatprep.subr.bf16.mxu0 %v1231
    %1839 = vmatpush1.bf16.msra.mxu0 %v1230
    %1840 = vmatprep.subr.bf16.mxu0 %v1238
    %1841 = vmatpush1.bf16.msra.mxu0 %v1237
    %1842 = vmatprep.subr.bf16.mxu0 %v1245
    %1843 = vmatpush1.bf16.msra.mxu0 %v1244
    %1844 = vmatprep.subr.bf16.mxu0 %v1252
    %1845 = vmatpush1.bf16.msra.mxu0 %v1251
    %1846 = vmatprep.subr.bf16.mxu0 %v1259
    %1847 = vmatpush1.bf16.msra.mxu0 %v1258
    %1848 = vmatprep.subr.bf16.mxu0 %v1266
    %1849 = vmatpush1.bf16.msra.mxu0 %v1265
    %1850 = vmatprep.subr.bf16.mxu0 %v1273
    %1851 = vmatpush1.bf16.msra.mxu0 %v1272
    %1852 = vmatprep.subr.bf16.mxu0 %v1280
    %1853 = vmatpush1.bf16.msra.mxu0 %v1279
    %1854 = vmatprep.subr.bf16.mxu0 %v1287
    %1855 = vmatpush1.bf16.msra.mxu0 %v1286
    %1856 = vmatprep.subr.bf16.mxu0 %v1294
    %1857 = vmatpush1.bf16.msra.mxu0 %v1293
    %1858 = vmatprep.subr.bf16.mxu0 %v1301
    %1859 = vmatpush1.bf16.msra.mxu0 %v1300
    %1860 = vmatprep.subr.bf16.mxu0 %v1308
    %1861 = vmatpush1.bf16.msra.mxu0 %v1307
    %1862 = vmatprep.subr.bf16.mxu0 %v1315
    %1863 = vmatpush1.bf16.msra.mxu0 %v1314
    %1864 = vmatprep.subr.bf16.mxu0 %v1322
    %1865 = vmatpush1.bf16.msra.mxu0 %v1321
    %1866 = vmatprep.subr.bf16.mxu0 %v1329
    %1867 = vmatpush1.bf16.msra.mxu0 %v1328
    %1868 = vmatprep.subr.bf16.mxu0 %v1336
    %1869 = vmatpush1.bf16.msra.mxu0 %v1335
    %1870 = vmatprep.mubr.bf16.mxu0 %v515
    %1871 = vmatmul.mubr.bf16.gmra.mrb[0].mxu0 %v514
    %v1872 = vpop.f32.mrb[0].mxu0
    %v1873 = vadd.f32 %v492, %v1872
    %v1874 = vpop.f32.mrb[0].mxu0
    %v1875 = vadd.f32 %v496, %v1874
    %v1876 = vpop.f32.mrb[0].mxu0
    %v1877 = vpop.f32.mrb[0].mxu0
    %1878 = vdwg.mxu0
    %1879 = vmatprep.subr.bf16.mxu0 %v1343
    %1880 = vmatpush1.bf16.msra.mxu0 %v1342
    %1881 = vmatprep.subr.bf16.mxu0 %v1350
    %1882 = vmatpush1.bf16.msra.mxu0 %v1349
    %1883 = vmatprep.subr.bf16.mxu0 %v1357
    %1884 = vmatpush1.bf16.msra.mxu0 %v1356
    %1885 = vmatprep.subr.bf16.mxu0 %v1364
    %1886 = vmatpush1.bf16.msra.mxu0 %v1363
    %1887 = vmatprep.subr.bf16.mxu0 %v1371
    %1888 = vmatpush1.bf16.msra.mxu0 %v1370
    %1889 = vmatprep.subr.bf16.mxu0 %v1378
    %1890 = vmatpush1.bf16.msra.mxu0 %v1377
    %1891 = vmatprep.subr.bf16.mxu0 %v1385
    %1892 = vmatpush1.bf16.msra.mxu0 %v1384
    %1893 = vmatprep.subr.bf16.mxu0 %v1392
    %1894 = vmatpush1.bf16.msra.mxu0 %v1391
    %1895 = vmatprep.subr.bf16.mxu0 %v1399
    %1896 = vmatpush1.bf16.msra.mxu0 %v1398
    %1897 = vmatprep.subr.bf16.mxu0 %v1406
    %1898 = vmatpush1.bf16.msra.mxu0 %v1405
    %1899 = vmatprep.subr.bf16.mxu0 %v1413
    %1900 = vmatpush1.bf16.msra.mxu0 %v1412
    %1901 = vmatprep.subr.bf16.mxu0 %v1420
    %1902 = vmatpush1.bf16.msra.mxu0 %v1419
    %1903 = vmatprep.subr.bf16.mxu0 %v1427
    %1904 = vmatpush1.bf16.msra.mxu0 %v1426
    %1905 = vmatprep.subr.bf16.mxu0 %v1434
    %1906 = vmatpush1.bf16.msra.mxu0 %v1433
    %1907 = vmatprep.subr.bf16.mxu0 %v1441
    %1908 = vmatpush1.bf16.msra.mxu0 %v1440
    %1909 = vmatprep.subr.bf16.mxu0 %v1448
    %1910 = vmatpush1.bf16.msra.mxu0 %v1447
    %1911 = vmatprep.mubr.bf16.mxu0 %v517
    %1912 = vmatmul.mubr.bf16.gmra.mrb[0].mxu0 %v516
    %v1913 = vpop.f32.mrb[0].mxu0
    %v1914 = vadd.f32 %v1873, %v1913
    %v1915 = vpop.f32.mrb[0].mxu0
    %v1916 = vadd.f32 %v1875, %v1915
    %v1917 = vpop.f32.mrb[0].mxu0
    %v1918 = vpop.f32.mrb[0].mxu0
    %1919 = vdwg.mxu0
    %1920 = vmatprep.subr.bf16.mxu0 0
    %1921 = vmatpush1.bf16.msra.mxu0 %v1232
    %1922 = vmatprep.subr.bf16.mxu0 0
    %1923 = vmatpush1.bf16.msra.mxu0 %v1239
    %1924 = vmatprep.subr.bf16.mxu0 0
    %1925 = vmatpush1.bf16.msra.mxu0 %v1246
    %1926 = vmatprep.subr.bf16.mxu0 0
    %1927 = vmatpush1.bf16.msra.mxu0 %v1253
    %1928 = vmatprep.subr.bf16.mxu0 0
    %1929 = vmatpush1.bf16.msra.mxu0 %v1260
    %1930 = vmatprep.subr.bf16.mxu0 0
    %1931 = vmatpush1.bf16.msra.mxu0 %v1267
    %1932 = vmatprep.subr.bf16.mxu0 0
    %1933 = vmatpush1.bf16.msra.mxu0 %v1274
    %1934 = vmatprep.subr.bf16.mxu0 0
    %1935 = vmatpush1.bf16.msra.mxu0 %v1281
    %1936 = vmatprep.subr.bf16.mxu0 0
    %1937 = vmatpush1.bf16.msra.mxu0 %v1288
    %1938 = vmatprep.subr.bf16.mxu0 0
    %1939 = vmatpush1.bf16.msra.mxu0 %v1295
    %1940 = vmatprep.subr.bf16.mxu0 0
    %1941 = vmatpush1.bf16.msra.mxu0 %v1302
    %1942 = vmatprep.subr.bf16.mxu0 0
    %1943 = vmatpush1.bf16.msra.mxu0 %v1309
    %1944 = vmatprep.subr.bf16.mxu0 0
    %1945 = vmatpush1.bf16.msra.mxu0 %v1316
    %1946 = vmatprep.subr.bf16.mxu0 0
    %1947 = vmatpush1.bf16.msra.mxu0 %v1323
    %1948 = vmatprep.subr.bf16.mxu0 0
    %1949 = vmatpush1.bf16.msra.mxu0 %v1330
    %1950 = vmatprep.subr.bf16.mxu0 0
    %1951 = vmatpush1.bf16.msra.mxu0 %v1337
    %1952 = vmatprep.mubr.bf16.mxu0 %v515
    %1953 = vmatmul.mubr.bf16.gmra.mrb[0].mxu0 %v514
    %v1954 = vpop.f32.mrb[0].mxu0
    %v1955 = vadd.f32 %v500, %v1954
    %v1956 = vpop.f32.mrb[0].mxu0
    %v1957 = vpop.f32.mrb[0].mxu0
    %v1958 = vpop.f32.mrb[0].mxu0
    %1959 = vdwg.mxu0
    %1960 = vmatprep.subr.bf16.mxu0 0
    %1961 = vmatpush1.bf16.msra.mxu0 %v1344
    %1962 = vmatprep.subr.bf16.mxu0 0
    %1963 = vmatpush1.bf16.msra.mxu0 %v1351
    %1964 = vmatprep.subr.bf16.mxu0 0
    %1965 = vmatpush1.bf16.msra.mxu0 %v1358
    %1966 = vmatprep.subr.bf16.mxu0 0
    %1967 = vmatpush1.bf16.msra.mxu0 %v1365
    %1968 = vmatprep.subr.bf16.mxu0 0
    %1969 = vmatpush1.bf16.msra.mxu0 %v1372
    %1970 = vmatprep.subr.bf16.mxu0 0
    %1971 = vmatpush1.bf16.msra.mxu0 %v1379
    %1972 = vmatprep.subr.bf16.mxu0 0
    %1973 = vmatpush1.bf16.msra.mxu0 %v1386
    %1974 = vmatprep.subr.bf16.mxu0 0
    %1975 = vmatpush1.bf16.msra.mxu0 %v1393
    %1976 = vmatprep.subr.bf16.mxu0 0
    %1977 = vmatpush1.bf16.msra.mxu0 %v1400
    %1978 = vmatprep.subr.bf16.mxu0 0
    %1979 = vmatpush1.bf16.msra.mxu0 %v1407
    %1980 = vmatprep.subr.bf16.mxu0 0
    %1981 = vmatpush1.bf16.msra.mxu0 %v1414
    %1982 = vmatprep.subr.bf16.mxu0 0
    %1983 = vmatpush1.bf16.msra.mxu0 %v1421
    %1984 = vmatprep.subr.bf16.mxu0 0
    %1985 = vmatpush1.bf16.msra.mxu0 %v1428
    %1986 = vmatprep.subr.bf16.mxu0 0
    %1987 = vmatpush1.bf16.msra.mxu0 %v1435
    %1988 = vmatprep.subr.bf16.mxu0 0
    %1989 = vmatpush1.bf16.msra.mxu0 %v1442
    %1990 = vmatprep.subr.bf16.mxu0 0
    %1991 = vmatpush1.bf16.msra.mxu0 %v1449
    %1992 = vmatprep.mubr.bf16.mxu0 %v517
    %1993 = vmatmul.mubr.bf16.gmra.mrb[0].mxu0 %v516
    %v1994 = vpop.f32.mrb[0].mxu0
    %v1995 = vadd.f32 %v1955, %v1994
    %v1996 = vpop.f32.mrb[0].mxu0
    %v1997 = vpop.f32.mrb[0].mxu0
    %v1998 = vpop.f32.mrb[0].mxu0
    %1999 = vdwg.mxu0
    %v2000 = vxor.u32 %v1750, 2147483648
    %v2001 = vxor.u32 %v1752, 2147483648
    %v2002 = vxor.u32 %v1832, 2147483648
    %v2003 = vxor.u32 %v1834, 2147483648
    %v2004 = vxor.u32 %v1914, 2147483648
    %v2005 = vxor.u32 %v1916, 2147483648
    %v2006 = vxor.u32 %v1995, 2147483648
    %v2007 = vmul.f32 %v2000, 1.442695
    %v2008 = vpow.pop %v2007
    %v2009 = vmul.f32 %v2001, 1.442695
    %v2010 = vpow.pop %v2009
    %v2011 = vmul.f32 %v2002, 1.442695
    %v2012 = vpow.pop %v2011
    %v2013 = vmul.f32 %v2003, 1.442695
    %v2014 = vpow.pop %v2013
    %v2015 = vmul.f32 %v2004, 1.442695
    %v2016 = vpow.pop %v2015
    %v2017 = vmul.f32 %v2005, 1.442695
    %v2018 = vpow.pop %v2017
    %v2019 = vmul.f32 %v2006, 1.442695
    %v2020 = vpow.pop %v2019
    %v2021 = vadd.f32 %v2008, 1.0
    %v2022 = vadd.f32 %v2010, 1.0
    %v2023 = vadd.f32 %v2012, 1.0
    %v2024 = vadd.f32 %v2014, 1.0
    %v2025 = vadd.f32 %v2016, 1.0
    %v2026 = vadd.f32 %v2018, 1.0
    %v2027 = vadd.f32 %v2020, 1.0
    %v2028 = vrcp.pop %v2021
    %v2029 = vmul.f32 1.0, %v2028
    %v2030 = vrcp.pop %v2022
    %v2031 = vmul.f32 1.0, %v2030
    %v2032 = vrcp.pop %v2023
    %v2033 = vmul.f32 1.0, %v2032
    %v2034 = vrcp.pop %v2024
    %v2035 = vmul.f32 1.0, %v2034
    %v2036 = vrcp.pop %v2025
    %v2037 = vmul.f32 1.0, %v2036
    %v2038 = vrcp.pop %v2026
    %v2039 = vmul.f32 1.0, %v2038
    %v2040 = vrcp.pop %v2027
    %v2041 = vmul.f32 1.0, %v2040
    %2042 = vst [vmem:[%s5] sm:$0xff] %v2029
    %2043 = vst [vmem:[%s5 + $0x8] sm:$0xff] %v2031
    %2044 = vst [vmem:[%s5 + $0x10] sm:$0xff] %v2033
    %2045 = vst [vmem:[%s5 + $0x18] sm:$0xff] %v2035
    %2046 = vst [vmem:[%s5 + $0x20] sm:$0xff] %v2037
    %2047 = vst [vmem:[%s5 + $0x28] sm:$0xff] %v2039
    %vm2048 = vcmask 130048
    %2049 = vst.msk [vmem:[%s5 + $0x30] sm:$0xff] %vm2048, %v2041
    // Predicated region
    $region30: #{decoder_forward.1} parent=1 // pred_check
      _
    $region31: #{decoder_forward.1} parent=1 // pred_check_branch
      %2051 = sbr.rel (0) target = $region33
    $region32: #{decoder_forward.1} parent=1 // pred_region
      _
    $region33: #{decoder_forward.1} parent=1 // pred_fallthru
      _
    // Predicated region
    $region34: #{decoder_forward.1} parent=1 // pred_check
      _
    $region35: #{decoder_forward.1} parent=1 // pred_check_branch
      %2053 = sbr.rel (0) target = $region37
    $region36: #{decoder_forward.1} parent=1 // pred_region
      _
    $region37: #{decoder_forward.1} parent=1 // pred_fallthru
      _
    %2054 = vsyncpa [#allocation4], 1
    %2055 = vsyncpa [#allocation6], 1

</llo_original>
